<compile_context>
chip_gen: v5e
topology: v5e:2x2
jax: 0.10.0
libtpu: 0.0.40
codegen_flags: <defaults>
</compile_context>

<pallas_src>
import math
import functools

import jax
import jax.numpy as jnp
from jax.experimental import pallas as pl
from jax.experimental.pallas import tpu as pltpu


def imm_kernel(wpn_ref, wgs_ref, wgy_ref, coords_ref, imgs_ref, out_ref,
               *, K, C, C_out, HW, std):
    """One grid step over `block_n` images.

    wpn_ref   : SMEM (2K, C)      point_net 1x1-conv weights
    wgs_ref   : SMEM (C_out, C)   generator weights for source channels
    wgy_ref   : SMEM (C_out, K)   generator weights for heatmaps (pre-scaled
                                  by exp(log_norm) in the wrapper)
    coords_ref: VMEM (2, HW)      row 0: lin_h[j // W], row 1: lin_w[j % W]
    imgs_ref  : VMEM (bn, 2*C*HW) [target channels | source channels]
    out_ref   : VMEM (bn, C_out*HW)
    """
    bn = imgs_ref.shape[0]

    # Grid-invariant spatial coefficients, broadcast ONCE and reused.
    c_major = jnp.broadcast_to(coords_ref[0:1, :], (bn, HW))
    c_minor = jnp.broadcast_to(coords_ref[1:2, :], (bn, HW))

    # Target channels: static 128-aligned lane slices of the dense block.
    tgt = [imgs_ref[:, c * HW:(c + 1) * HW] for c in range(C)]

    inv_two_var = 0.5 / (std * std)

    def keypoint(chan, coord):
        # point_net channel `chan` via SMEM-scalar broadcast FMAs (VPU).
        phi = wpn_ref[chan, 0] * tgt[0]
        for c in range(1, C):
            phi = phi + wpn_ref[chan, c] * tgt[c]
        # spatial softmax expectation; normalized map never materialized.
        phi = phi - jnp.max(phi, axis=-1, keepdims=True)
        e = jnp.exp(phi)                                    # (bn, HW)
        denom = jnp.sum(e, axis=-1, keepdims=True)          # (bn, 1)
        r = pl.reciprocal(denom, approx=True)               # EUP
        inv_denom = r * (2.0 - denom * r)                   # cheap Newton, (bn,1) only
        return jnp.sum(e * coord, axis=-1, keepdims=True) * inv_denom

    # ---- keypoints + unnormalized gaussian heatmaps --------------------------
    heat = []
    for k in range(K):
        u_row = keypoint(k, c_major)                         # (bn, 1)
        u_col = keypoint(K + k, c_minor)                     # (bn, 1)
        dx = c_major - u_row
        dy = c_minor - u_col
        # exp(log_norm) is folded into wgy_ref by the wrapper.
        heat.append(jnp.exp(-(dx * dx + dy * dy) * inv_two_var))   # (bn, HW)

    # ---- generator: fused 1x1 conv over [source channels, heatmaps] ----------
    src = [imgs_ref[:, (C + c) * HW:(C + c + 1) * HW] for c in range(C)]
    for o in range(C_out):
        acc = wgs_ref[o, 0] * src[0]
        for c in range(1, C):
            acc = acc + wgs_ref[o, c] * src[c]
        for k in range(K):
            acc = acc + wgy_ref[o, k] * heat[k]
        out_ref[:, o * HW:(o + 1) * HW] = acc.astype(out_ref.dtype)


def _tensorcores_per_chip():
    try:
        kind = jax.devices()[0].device_kind.lower()
    except Exception:
        return 1
    # v7x: 2 independent TensorCores/chip. v4/v5p: 2 cores exposed via megacore.
    if any(tag in kind for tag in ("v7", "7x", "v4", "v5p")):
        return 2
    return 1


def _pick_block_n(N, max_block=512):
    """One grid step per TensorCore; single step on single-TC chips."""
    tc = _tensorcores_per_chip()
    steps = tc if (tc > 1 and N % tc == 0) else 1
    bn = N // steps
    # Keep blocks modest for very large batches (irrelevant at demo scale).
    while bn > max_block and N % (steps * 2) == 0:
        steps *= 2
        bn = N // steps
    return bn


def imm_forward(source_images, target_images, w_pn, w_gen_src, w_gen_y,
                std=0.2, block_n=None):
    N, C, H, W = target_images.shape
    # Both the kernel flattening and the PyTorch reference only map spatial
    # axes consistently when the feature map is square.
    assert H == W, "Imm kernel requires square feature maps (H == W)"
    K2 = w_pn.shape[0]
    K = K2 // 2
    C_out = w_gen_src.shape[0]
    HW = H * W

    if block_n is None:
        block_n = _pick_block_n(N)
    assert N % block_n == 0
    grid = (N // block_n,)

    # One dense, lane-packed image stream: [target | source] on channels.
    imgs = jnp.concatenate([target_images, source_images], axis=1)
    imgs = imgs.reshape(N, 2 * C * HW).astype(jnp.float32)

    # Grid-invariant coordinate coefficients, exact integer construction.
    lin_h = jnp.linspace(-1.0, 1.0, H, dtype=jnp.float32)
    lin_w = jnp.linspace(-1.0, 1.0, W, dtype=jnp.float32)
    major = jnp.repeat(lin_h, W)             # value at flat index j is lin_h[j // W]
    minor = jnp.tile(lin_w, H)               # value at flat index j is lin_w[j % W]
    coords = jnp.stack([major, minor], axis=0).astype(jnp.float32)   # (2, HW)

    # Gaussian normalizer folded into the generator heatmap weights.
    log_norm = -2.0 * math.log(std) - math.log(2.0 * math.pi)
    w_pn_f = w_pn.astype(jnp.float32)                                  # (2K, C)
    w_gen_src_f = w_gen_src.astype(jnp.float32)                        # (C_out, C)
    w_gen_y_scaled = (w_gen_y * math.exp(log_norm)).astype(jnp.float32)  # (C_out, K)

    kernel = functools.partial(imm_kernel, K=K, C=C, C_out=C_out, HW=HW, std=std)
    out = pl.pallas_call(
        kernel,
        out_shape=jax.ShapeDtypeStruct((N, C_out * HW), jnp.float32),
        grid_spec=pltpu.PrefetchScalarGridSpec(
            num_scalar_prefetch=0,
            grid=grid,
            in_specs=[
                pl.BlockSpec(memory_space=pltpu.MemorySpace.SMEM),      # w_pn
                pl.BlockSpec(memory_space=pltpu.MemorySpace.SMEM),      # w_gen_src
                pl.BlockSpec(memory_space=pltpu.MemorySpace.SMEM),      # w_gen_y (scaled)
                pl.BlockSpec((2, HW), lambda n: (0, 0)),                # coords
                pl.BlockSpec((block_n, 2 * C * HW), lambda n: (n, 0)),  # images
            ],
            out_specs=pl.BlockSpec((block_n, C_out * HW), lambda n: (n, 0)),
        ),
        compiler_params=pltpu.CompilerParams(
            dimension_semantics=("parallel",)),
    )(w_pn_f, w_gen_src_f, w_gen_y_scaled, coords, imgs)
    return out.reshape(N, C_out, H, W)


def imm_reference(source_images, target_images, w_pn, w_gen_src, w_gen_y,
                  std=0.2):
    """Pure-JAX transcription of the PyTorch forward, for validation."""
    N, C, H, W = target_images.shape
    K2 = w_pn.shape[0]
    K = K2 // 2
    phi = jnp.einsum('oc,nchw->nohw', w_pn, target_images)
    sm = jax.nn.softmax(phi.reshape(N, K2, H * W), axis=-1).reshape(N, K2, H, W)
    row_map = sm[:, :K]                                    # features[..., 0]
    col_map = sm[:, K:]                                    # features[..., 1]
    lin_h = jnp.linspace(-1.0, 1.0, H)
    lin_w = jnp.linspace(-1.0, 1.0, W)
    u_row = (row_map.sum(-1) * lin_h).sum(-1)              # (N, K)
    u_col = (col_map.sum(-2) * lin_w).sum(-1)              # (N, K)
    log_norm = -jnp.log(std) - 0.5 * jnp.log(2.0 * jnp.pi)
    lp_x = -(lin_w[None, None, :, None] - u_row[:, :, None, None]) ** 2 / (
        2.0 * std ** 2) + log_norm                         # (N, K, W, 1)
    lp_y = -(lin_h[None, None, None, :] - u_col[:, :, None, None]) ** 2 / (
        2.0 * std ** 2) + log_norm                         # (N, K, 1, H)
    y = jnp.exp(lp_x + lp_y)                               # (N, K, W, H)
    # generator: 1x1 conv on channel-concat (valid since H == W, as in PyTorch)
    out = (jnp.einsum('oc,nchw->nohw', w_gen_src, source_images) +
           jnp.einsum('ok,nkhw->nohw', w_gen_y, y))
    return out


if __name__ == "__main__":
    N, C, H, W = 16, 4, 16, 16
    K = 4            # number of keypoints; point_net emits 2*K channels
    C_out = 3
    std = 0.2

    key = jax.random.PRNGKey(0)
    k1, k2, k3, k4, k5 = jax.random.split(key, 5)
    source_images = jax.random.normal(k1, (N, C, H, W), dtype=jnp.float32)
    target_images = jax.random.normal(k2, (N, C, H, W), dtype=jnp.float32)
    w_pn = 0.5 * jax.random.normal(k3, (2 * K, C), dtype=jnp.float32)
    w_gen_src = 0.3 * jax.random.normal(k4, (C_out, C), dtype=jnp.float32)
    w_gen_y = 0.3 * jax.random.normal(k5, (C_out, K), dtype=jnp.float32)

    out = imm_forward(source_images, target_images, w_pn, w_gen_src, w_gen_y,
                      std=std)
    out = jax.block_until_ready(out)

    ref = imm_reference(source_images, target_images, w_pn, w_gen_src,
                        w_gen_y, std=std)
    assert out.shape == (N, C_out, H, W)
    if not jnp.allclose(out, ref, atol=1e-2, rtol=1e-2):
        raise AssertionError(
            f"mismatch vs reference, max abs diff = "
            f"{float(jnp.max(jnp.abs(out - ref)))}")
    print("KERNEL_OK")
</pallas_src>

<mosaic_0001>
module attributes {stable_mosaic.version = 11 : i64} {
  func.func @imm_kernel(%arg0: i32, %arg1: memref<8x4xf32, #tpu.memory_space<smem>>, %arg2: memref<3x4xf32, #tpu.memory_space<smem>>, %arg3: memref<3x4xf32, #tpu.memory_space<smem>>, %arg4: memref<2x256xf32, #tpu.memory_space<vmem>>, %arg5: memref<16x2048xf32, #tpu.memory_space<vmem>>, %arg6: memref<16x768xf32, #tpu.memory_space<vmem>>) attributes {dimension_semantics = [#tpu.dimension_semantics<parallel>], iteration_bounds = array<i64: 1>, scalar_prefetch = 0 : i64, scratch_operands = 0 : i64, tpu.core_type = #tpu.core_type<tc>, window_params = [{transform_indices = @transform_0, window_bounds = array<i64: 8, 4>}, {transform_indices = @transform_1, window_bounds = array<i64: 3, 4>}, {transform_indices = @transform_2, window_bounds = array<i64: 3, 4>}, {pipeline_mode = #tpu.pipeline_mode<synchronous>, transform_indices = @transform_3, window_bounds = array<i64: 2, 256>}, {transform_indices = @transform_4, window_bounds = array<i64: 16, 2048>}, {transform_indices = @transform_5, window_bounds = array<i64: 16, 768>}]} {
    %c0 = arith.constant 0 : index
    %c0_0 = arith.constant 0 : index
    %0 = vector.load %arg4[%c0, %c0_0] : memref<2x256xf32, #tpu.memory_space<vmem>>, vector<1x256xf32>
    %1 = vector.shape_cast %0 : vector<1x256xf32> to vector<1x256xf32>
    %2 = vector.broadcast %1 : vector<1x256xf32> to vector<16x256xf32>
    %c1 = arith.constant 1 : index
    %c0_1 = arith.constant 0 : index
    %3 = vector.load %arg4[%c1, %c0_1] : memref<2x256xf32, #tpu.memory_space<vmem>>, vector<1x256xf32>
    %4 = vector.shape_cast %3 : vector<1x256xf32> to vector<1x256xf32>
    %5 = vector.broadcast %4 : vector<1x256xf32> to vector<16x256xf32>
    %c0_2 = arith.constant 0 : index
    %c0_3 = arith.constant 0 : index
    %6 = vector.load %arg5[%c0_2, %c0_3] : memref<16x2048xf32, #tpu.memory_space<vmem>>, vector<16x256xf32>
    %c0_4 = arith.constant 0 : index
    %c256 = arith.constant 256 : index
    %7 = vector.load %arg5[%c0_4, %c256] : memref<16x2048xf32, #tpu.memory_space<vmem>>, vector<16x256xf32>
    %c0_5 = arith.constant 0 : index
    %c512 = arith.constant 512 : index
    %8 = vector.load %arg5[%c0_5, %c512] : memref<16x2048xf32, #tpu.memory_space<vmem>>, vector<16x256xf32>
    %c0_6 = arith.constant 0 : index
    %c768 = arith.constant 768 : index
    %9 = vector.load %arg5[%c0_6, %c768] : memref<16x2048xf32, #tpu.memory_space<vmem>>, vector<16x256xf32>
    %c0_7 = arith.constant 0 : index
    %c0_8 = arith.constant 0 : index
    %10 = memref.load %arg1[%c0_7, %c0_8] : memref<8x4xf32, #tpu.memory_space<smem>>
    %11 = vector.broadcast %10 : f32 to vector<16x256xf32>
    %12 = arith.mulf %11, %6 : vector<16x256xf32>
    %c0_9 = arith.constant 0 : index
    %c1_10 = arith.constant 1 : index
    %13 = memref.load %arg1[%c0_9, %c1_10] : memref<8x4xf32, #tpu.memory_space<smem>>
    %14 = vector.broadcast %13 : f32 to vector<16x256xf32>
    %15 = arith.mulf %14, %7 : vector<16x256xf32>
    %16 = arith.addf %12, %15 : vector<16x256xf32>
    %c0_11 = arith.constant 0 : index
    %c2 = arith.constant 2 : index
    %17 = memref.load %arg1[%c0_11, %c2] : memref<8x4xf32, #tpu.memory_space<smem>>
    %18 = vector.broadcast %17 : f32 to vector<16x256xf32>
    %19 = arith.mulf %18, %8 : vector<16x256xf32>
    %20 = arith.addf %16, %19 : vector<16x256xf32>
    %c0_12 = arith.constant 0 : index
    %c3 = arith.constant 3 : index
    %21 = memref.load %arg1[%c0_12, %c3] : memref<8x4xf32, #tpu.memory_space<smem>>
    %22 = vector.broadcast %21 : f32 to vector<16x256xf32>
    %23 = arith.mulf %22, %9 : vector<16x256xf32>
    %24 = arith.addf %20, %23 : vector<16x256xf32>
    %cst = arith.constant dense<0xFF800000> : vector<16xf32>
    %25 = vector.multi_reduction <maximumf>, %24, %cst [1] : vector<16x256xf32> to vector<16xf32>
    %26 = vector.shape_cast %25 : vector<16xf32> to vector<16x1xf32>
    %27 = vector.broadcast %26 : vector<16x1xf32> to vector<16x256xf32>
    %28 = arith.subf %24, %27 : vector<16x256xf32>
    %29 = math.exp %28 : vector<16x256xf32>
    %cst_13 = arith.constant dense<0.000000e+00> : vector<16xf32>
    %30 = vector.multi_reduction <add>, %29, %cst_13 [1] : vector<16x256xf32> to vector<16xf32>
    %31 = vector.shape_cast %30 : vector<16xf32> to vector<16x1xf32>
    %32 = tpu.reciprocal %31 {approx = true} : vector<16x1xf32> -> vector<16x1xf32>
    %33 = arith.mulf %31, %32 : vector<16x1xf32>
    %cst_14 = arith.constant 2.000000e+00 : f32
    %34 = vector.broadcast %cst_14 : f32 to vector<16x1xf32>
    %35 = arith.subf %34, %33 : vector<16x1xf32>
    %36 = arith.mulf %32, %35 : vector<16x1xf32>
    %37 = arith.mulf %29, %2 : vector<16x256xf32>
    %cst_15 = arith.constant dense<0.000000e+00> : vector<16xf32>
    %38 = vector.multi_reduction <add>, %37, %cst_15 [1] : vector<16x256xf32> to vector<16xf32>
    %39 = vector.shape_cast %38 : vector<16xf32> to vector<16x1xf32>
    %40 = arith.mulf %39, %36 : vector<16x1xf32>
    %c4 = arith.constant 4 : index
    %c0_16 = arith.constant 0 : index
    %41 = memref.load %arg1[%c4, %c0_16] : memref<8x4xf32, #tpu.memory_space<smem>>
    %42 = vector.broadcast %41 : f32 to vector<16x256xf32>
    %43 = arith.mulf %42, %6 : vector<16x256xf32>
    %c4_17 = arith.constant 4 : index
    %c1_18 = arith.constant 1 : index
    %44 = memref.load %arg1[%c4_17, %c1_18] : memref<8x4xf32, #tpu.memory_space<smem>>
    %45 = vector.broadcast %44 : f32 to vector<16x256xf32>
    %46 = arith.mulf %45, %7 : vector<16x256xf32>
    %47 = arith.addf %43, %46 : vector<16x256xf32>
    %c4_19 = arith.constant 4 : index
    %c2_20 = arith.constant 2 : index
    %48 = memref.load %arg1[%c4_19, %c2_20] : memref<8x4xf32, #tpu.memory_space<smem>>
    %49 = vector.broadcast %48 : f32 to vector<16x256xf32>
    %50 = arith.mulf %49, %8 : vector<16x256xf32>
    %51 = arith.addf %47, %50 : vector<16x256xf32>
    %c4_21 = arith.constant 4 : index
    %c3_22 = arith.constant 3 : index
    %52 = memref.load %arg1[%c4_21, %c3_22] : memref<8x4xf32, #tpu.memory_space<smem>>
    %53 = vector.broadcast %52 : f32 to vector<16x256xf32>
    %54 = arith.mulf %53, %9 : vector<16x256xf32>
    %55 = arith.addf %51, %54 : vector<16x256xf32>
    %cst_23 = arith.constant dense<0xFF800000> : vector<16xf32>
    %56 = vector.multi_reduction <maximumf>, %55, %cst_23 [1] : vector<16x256xf32> to vector<16xf32>
    %57 = vector.shape_cast %56 : vector<16xf32> to vector<16x1xf32>
    %58 = vector.broadcast %57 : vector<16x1xf32> to vector<16x256xf32>
    %59 = arith.subf %55, %58 : vector<16x256xf32>
    %60 = math.exp %59 : vector<16x256xf32>
    %cst_24 = arith.constant dense<0.000000e+00> : vector<16xf32>
    %61 = vector.multi_reduction <add>, %60, %cst_24 [1] : vector<16x256xf32> to vector<16xf32>
    %62 = vector.shape_cast %61 : vector<16xf32> to vector<16x1xf32>
    %63 = tpu.reciprocal %62 {approx = true} : vector<16x1xf32> -> vector<16x1xf32>
    %64 = arith.mulf %62, %63 : vector<16x1xf32>
    %cst_25 = arith.constant 2.000000e+00 : f32
    %65 = vector.broadcast %cst_25 : f32 to vector<16x1xf32>
    %66 = arith.subf %65, %64 : vector<16x1xf32>
    %67 = arith.mulf %63, %66 : vector<16x1xf32>
    %68 = arith.mulf %60, %5 : vector<16x256xf32>
    %cst_26 = arith.constant dense<0.000000e+00> : vector<16xf32>
    %69 = vector.multi_reduction <add>, %68, %cst_26 [1] : vector<16x256xf32> to vector<16xf32>
    %70 = vector.shape_cast %69 : vector<16xf32> to vector<16x1xf32>
    %71 = arith.mulf %70, %67 : vector<16x1xf32>
    %72 = vector.broadcast %40 : vector<16x1xf32> to vector<16x256xf32>
    %73 = arith.subf %2, %72 : vector<16x256xf32>
    %74 = vector.broadcast %71 : vector<16x1xf32> to vector<16x256xf32>
    %75 = arith.subf %5, %74 : vector<16x256xf32>
    %76 = arith.mulf %73, %73 : vector<16x256xf32>
    %77 = arith.mulf %75, %75 : vector<16x256xf32>
    %78 = arith.addf %76, %77 : vector<16x256xf32>
    %cst_27 = arith.constant 0.000000e+00 : f32
    %79 = vector.broadcast %cst_27 : f32 to vector<16x256xf32>
    %80 = arith.subf %79, %78 : vector<16x256xf32>
    %cst_28 = arith.constant 1.250000e+01 : f32
    %81 = vector.broadcast %cst_28 : f32 to vector<16x256xf32>
    %82 = arith.mulf %80, %81 : vector<16x256xf32>
    %83 = math.exp %82 : vector<16x256xf32>
    %c1_29 = arith.constant 1 : index
    %c0_30 = arith.constant 0 : index
    %84 = memref.load %arg1[%c1_29, %c0_30] : memref<8x4xf32, #tpu.memory_space<smem>>
    %85 = vector.broadcast %84 : f32 to vector<16x256xf32>
    %86 = arith.mulf %85, %6 : vector<16x256xf32>
    %c1_31 = arith.constant 1 : index
    %c1_32 = arith.constant 1 : index
    %87 = memref.load %arg1[%c1_31, %c1_32] : memref<8x4xf32, #tpu.memory_space<smem>>
    %88 = vector.broadcast %87 : f32 to vector<16x256xf32>
    %89 = arith.mulf %88, %7 : vector<16x256xf32>
    %90 = arith.addf %86, %89 : vector<16x256xf32>
    %c1_33 = arith.constant 1 : index
    %c2_34 = arith.constant 2 : index
    %91 = memref.load %arg1[%c1_33, %c2_34] : memref<8x4xf32, #tpu.memory_space<smem>>
    %92 = vector.broadcast %91 : f32 to vector<16x256xf32>
    %93 = arith.mulf %92, %8 : vector<16x256xf32>
    %94 = arith.addf %90, %93 : vector<16x256xf32>
    %c1_35 = arith.constant 1 : index
    %c3_36 = arith.constant 3 : index
    %95 = memref.load %arg1[%c1_35, %c3_36] : memref<8x4xf32, #tpu.memory_space<smem>>
    %96 = vector.broadcast %95 : f32 to vector<16x256xf32>
    %97 = arith.mulf %96, %9 : vector<16x256xf32>
    %98 = arith.addf %94, %97 : vector<16x256xf32>
    %cst_37 = arith.constant dense<0xFF800000> : vector<16xf32>
    %99 = vector.multi_reduction <maximumf>, %98, %cst_37 [1] : vector<16x256xf32> to vector<16xf32>
    %100 = vector.shape_cast %99 : vector<16xf32> to vector<16x1xf32>
    %101 = vector.broadcast %100 : vector<16x1xf32> to vector<16x256xf32>
    %102 = arith.subf %98, %101 : vector<16x256xf32>
    %103 = math.exp %102 : vector<16x256xf32>
    %cst_38 = arith.constant dense<0.000000e+00> : vector<16xf32>
    %104 = vector.multi_reduction <add>, %103, %cst_38 [1] : vector<16x256xf32> to vector<16xf32>
    %105 = vector.shape_cast %104 : vector<16xf32> to vector<16x1xf32>
    %106 = tpu.reciprocal %105 {approx = true} : vector<16x1xf32> -> vector<16x1xf32>
    %107 = arith.mulf %105, %106 : vector<16x1xf32>
    %cst_39 = arith.constant 2.000000e+00 : f32
    %108 = vector.broadcast %cst_39 : f32 to vector<16x1xf32>
    %109 = arith.subf %108, %107 : vector<16x1xf32>
    %110 = arith.mulf %106, %109 : vector<16x1xf32>
    %111 = arith.mulf %103, %2 : vector<16x256xf32>
    %cst_40 = arith.constant dense<0.000000e+00> : vector<16xf32>
    %112 = vector.multi_reduction <add>, %111, %cst_40 [1] : vector<16x256xf32> to vector<16xf32>
    %113 = vector.shape_cast %112 : vector<16xf32> to vector<16x1xf32>
    %114 = arith.mulf %113, %110 : vector<16x1xf32>
    %c5 = arith.constant 5 : index
    %c0_41 = arith.constant 0 : index
    %115 = memref.load %arg1[%c5, %c0_41] : memref<8x4xf32, #tpu.memory_space<smem>>
    %116 = vector.broadcast %115 : f32 to vector<16x256xf32>
    %117 = arith.mulf %116, %6 : vector<16x256xf32>
    %c5_42 = arith.constant 5 : index
    %c1_43 = arith.constant 1 : index
    %118 = memref.load %arg1[%c5_42, %c1_43] : memref<8x4xf32, #tpu.memory_space<smem>>
    %119 = vector.broadcast %118 : f32 to vector<16x256xf32>
    %120 = arith.mulf %119, %7 : vector<16x256xf32>
    %121 = arith.addf %117, %120 : vector<16x256xf32>
    %c5_44 = arith.constant 5 : index
    %c2_45 = arith.constant 2 : index
    %122 = memref.load %arg1[%c5_44, %c2_45] : memref<8x4xf32, #tpu.memory_space<smem>>
    %123 = vector.broadcast %122 : f32 to vector<16x256xf32>
    %124 = arith.mulf %123, %8 : vector<16x256xf32>
    %125 = arith.addf %121, %124 : vector<16x256xf32>
    %c5_46 = arith.constant 5 : index
    %c3_47 = arith.constant 3 : index
    %126 = memref.load %arg1[%c5_46, %c3_47] : memref<8x4xf32, #tpu.memory_space<smem>>
    %127 = vector.broadcast %126 : f32 to vector<16x256xf32>
    %128 = arith.mulf %127, %9 : vector<16x256xf32>
    %129 = arith.addf %125, %128 : vector<16x256xf32>
    %cst_48 = arith.constant dense<0xFF800000> : vector<16xf32>
    %130 = vector.multi_reduction <maximumf>, %129, %cst_48 [1] : vector<16x256xf32> to vector<16xf32>
    %131 = vector.shape_cast %130 : vector<16xf32> to vector<16x1xf32>
    %132 = vector.broadcast %131 : vector<16x1xf32> to vector<16x256xf32>
    %133 = arith.subf %129, %132 : vector<16x256xf32>
    %134 = math.exp %133 : vector<16x256xf32>
    %cst_49 = arith.constant dense<0.000000e+00> : vector<16xf32>
    %135 = vector.multi_reduction <add>, %134, %cst_49 [1] : vector<16x256xf32> to vector<16xf32>
    %136 = vector.shape_cast %135 : vector<16xf32> to vector<16x1xf32>
    %137 = tpu.reciprocal %136 {approx = true} : vector<16x1xf32> -> vector<16x1xf32>
    %138 = arith.mulf %136, %137 : vector<16x1xf32>
    %cst_50 = arith.constant 2.000000e+00 : f32
    %139 = vector.broadcast %cst_50 : f32 to vector<16x1xf32>
    %140 = arith.subf %139, %138 : vector<16x1xf32>
    %141 = arith.mulf %137, %140 : vector<16x1xf32>
    %142 = arith.mulf %134, %5 : vector<16x256xf32>
    %cst_51 = arith.constant dense<0.000000e+00> : vector<16xf32>
    %143 = vector.multi_reduction <add>, %142, %cst_51 [1] : vector<16x256xf32> to vector<16xf32>
    %144 = vector.shape_cast %143 : vector<16xf32> to vector<16x1xf32>
    %145 = arith.mulf %144, %141 : vector<16x1xf32>
    %146 = vector.broadcast %114 : vector<16x1xf32> to vector<16x256xf32>
    %147 = arith.subf %2, %146 : vector<16x256xf32>
    %148 = vector.broadcast %145 : vector<16x1xf32> to vector<16x256xf32>
    %149 = arith.subf %5, %148 : vector<16x256xf32>
    %150 = arith.mulf %147, %147 : vector<16x256xf32>
    %151 = arith.mulf %149, %149 : vector<16x256xf32>
    %152 = arith.addf %150, %151 : vector<16x256xf32>
    %cst_52 = arith.constant 0.000000e+00 : f32
    %153 = vector.broadcast %cst_52 : f32 to vector<16x256xf32>
    %154 = arith.subf %153, %152 : vector<16x256xf32>
    %cst_53 = arith.constant 1.250000e+01 : f32
    %155 = vector.broadcast %cst_53 : f32 to vector<16x256xf32>
    %156 = arith.mulf %154, %155 : vector<16x256xf32>
    %157 = math.exp %156 : vector<16x256xf32>
    %c2_54 = arith.constant 2 : index
    %c0_55 = arith.constant 0 : index
    %158 = memref.load %arg1[%c2_54, %c0_55] : memref<8x4xf32, #tpu.memory_space<smem>>
    %159 = vector.broadcast %158 : f32 to vector<16x256xf32>
    %160 = arith.mulf %159, %6 : vector<16x256xf32>
    %c2_56 = arith.constant 2 : index
    %c1_57 = arith.constant 1 : index
    %161 = memref.load %arg1[%c2_56, %c1_57] : memref<8x4xf32, #tpu.memory_space<smem>>
    %162 = vector.broadcast %161 : f32 to vector<16x256xf32>
    %163 = arith.mulf %162, %7 : vector<16x256xf32>
    %164 = arith.addf %160, %163 : vector<16x256xf32>
    %c2_58 = arith.constant 2 : index
    %c2_59 = arith.constant 2 : index
    %165 = memref.load %arg1[%c2_58, %c2_59] : memref<8x4xf32, #tpu.memory_space<smem>>
    %166 = vector.broadcast %165 : f32 to vector<16x256xf32>
    %167 = arith.mulf %166, %8 : vector<16x256xf32>
    %168 = arith.addf %164, %167 : vector<16x256xf32>
    %c2_60 = arith.constant 2 : index
    %c3_61 = arith.constant 3 : index
    %169 = memref.load %arg1[%c2_60, %c3_61] : memref<8x4xf32, #tpu.memory_space<smem>>
    %170 = vector.broadcast %169 : f32 to vector<16x256xf32>
    %171 = arith.mulf %170, %9 : vector<16x256xf32>
    %172 = arith.addf %168, %171 : vector<16x256xf32>
    %cst_62 = arith.constant dense<0xFF800000> : vector<16xf32>
    %173 = vector.multi_reduction <maximumf>, %172, %cst_62 [1] : vector<16x256xf32> to vector<16xf32>
    %174 = vector.shape_cast %173 : vector<16xf32> to vector<16x1xf32>
    %175 = vector.broadcast %174 : vector<16x1xf32> to vector<16x256xf32>
    %176 = arith.subf %172, %175 : vector<16x256xf32>
    %177 = math.exp %176 : vector<16x256xf32>
    %cst_63 = arith.constant dense<0.000000e+00> : vector<16xf32>
    %178 = vector.multi_reduction <add>, %177, %cst_63 [1] : vector<16x256xf32> to vector<16xf32>
    %179 = vector.shape_cast %178 : vector<16xf32> to vector<16x1xf32>
    %180 = tpu.reciprocal %179 {approx = true} : vector<16x1xf32> -> vector<16x1xf32>
    %181 = arith.mulf %179, %180 : vector<16x1xf32>
    %cst_64 = arith.constant 2.000000e+00 : f32
    %182 = vector.broadcast %cst_64 : f32 to vector<16x1xf32>
    %183 = arith.subf %182, %181 : vector<16x1xf32>
    %184 = arith.mulf %180, %183 : vector<16x1xf32>
    %185 = arith.mulf %177, %2 : vector<16x256xf32>
    %cst_65 = arith.constant dense<0.000000e+00> : vector<16xf32>
    %186 = vector.multi_reduction <add>, %185, %cst_65 [1] : vector<16x256xf32> to vector<16xf32>
    %187 = vector.shape_cast %186 : vector<16xf32> to vector<16x1xf32>
    %188 = arith.mulf %187, %184 : vector<16x1xf32>
    %c6 = arith.constant 6 : index
    %c0_66 = arith.constant 0 : index
    %189 = memref.load %arg1[%c6, %c0_66] : memref<8x4xf32, #tpu.memory_space<smem>>
    %190 = vector.broadcast %189 : f32 to vector<16x256xf32>
    %191 = arith.mulf %190, %6 : vector<16x256xf32>
    %c6_67 = arith.constant 6 : index
    %c1_68 = arith.constant 1 : index
    %192 = memref.load %arg1[%c6_67, %c1_68] : memref<8x4xf32, #tpu.memory_space<smem>>
    %193 = vector.broadcast %192 : f32 to vector<16x256xf32>
    %194 = arith.mulf %193, %7 : vector<16x256xf32>
    %195 = arith.addf %191, %194 : vector<16x256xf32>
    %c6_69 = arith.constant 6 : index
    %c2_70 = arith.constant 2 : index
    %196 = memref.load %arg1[%c6_69, %c2_70] : memref<8x4xf32, #tpu.memory_space<smem>>
    %197 = vector.broadcast %196 : f32 to vector<16x256xf32>
    %198 = arith.mulf %197, %8 : vector<16x256xf32>
    %199 = arith.addf %195, %198 : vector<16x256xf32>
    %c6_71 = arith.constant 6 : index
    %c3_72 = arith.constant 3 : index
    %200 = memref.load %arg1[%c6_71, %c3_72] : memref<8x4xf32, #tpu.memory_space<smem>>
    %201 = vector.broadcast %200 : f32 to vector<16x256xf32>
    %202 = arith.mulf %201, %9 : vector<16x256xf32>
    %203 = arith.addf %199, %202 : vector<16x256xf32>
    %cst_73 = arith.constant dense<0xFF800000> : vector<16xf32>
    %204 = vector.multi_reduction <maximumf>, %203, %cst_73 [1] : vector<16x256xf32> to vector<16xf32>
    %205 = vector.shape_cast %204 : vector<16xf32> to vector<16x1xf32>
    %206 = vector.broadcast %205 : vector<16x1xf32> to vector<16x256xf32>
    %207 = arith.subf %203, %206 : vector<16x256xf32>
    %208 = math.exp %207 : vector<16x256xf32>
    %cst_74 = arith.constant dense<0.000000e+00> : vector<16xf32>
    %209 = vector.multi_reduction <add>, %208, %cst_74 [1] : vector<16x256xf32> to vector<16xf32>
    %210 = vector.shape_cast %209 : vector<16xf32> to vector<16x1xf32>
    %211 = tpu.reciprocal %210 {approx = true} : vector<16x1xf32> -> vector<16x1xf32>
    %212 = arith.mulf %210, %211 : vector<16x1xf32>
    %cst_75 = arith.constant 2.000000e+00 : f32
    %213 = vector.broadcast %cst_75 : f32 to vector<16x1xf32>
    %214 = arith.subf %213, %212 : vector<16x1xf32>
    %215 = arith.mulf %211, %214 : vector<16x1xf32>
    %216 = arith.mulf %208, %5 : vector<16x256xf32>
    %cst_76 = arith.constant dense<0.000000e+00> : vector<16xf32>
    %217 = vector.multi_reduction <add>, %216, %cst_76 [1] : vector<16x256xf32> to vector<16xf32>
    %218 = vector.shape_cast %217 : vector<16xf32> to vector<16x1xf32>
    %219 = arith.mulf %218, %215 : vector<16x1xf32>
    %220 = vector.broadcast %188 : vector<16x1xf32> to vector<16x256xf32>
    %221 = arith.subf %2, %220 : vector<16x256xf32>
    %222 = vector.broadcast %219 : vector<16x1xf32> to vector<16x256xf32>
    %223 = arith.subf %5, %222 : vector<16x256xf32>
    %224 = arith.mulf %221, %221 : vector<16x256xf32>
    %225 = arith.mulf %223, %223 : vector<16x256xf32>
    %226 = arith.addf %224, %225 : vector<16x256xf32>
    %cst_77 = arith.constant 0.000000e+00 : f32
    %227 = vector.broadcast %cst_77 : f32 to vector<16x256xf32>
    %228 = arith.subf %227, %226 : vector<16x256xf32>
    %cst_78 = arith.constant 1.250000e+01 : f32
    %229 = vector.broadcast %cst_78 : f32 to vector<16x256xf32>
    %230 = arith.mulf %228, %229 : vector<16x256xf32>
    %231 = math.exp %230 : vector<16x256xf32>
    %c3_79 = arith.constant 3 : index
    %c0_80 = arith.constant 0 : index
    %232 = memref.load %arg1[%c3_79, %c0_80] : memref<8x4xf32, #tpu.memory_space<smem>>
    %233 = vector.broadcast %232 : f32 to vector<16x256xf32>
    %234 = arith.mulf %233, %6 : vector<16x256xf32>
    %c3_81 = arith.constant 3 : index
    %c1_82 = arith.constant 1 : index
    %235 = memref.load %arg1[%c3_81, %c1_82] : memref<8x4xf32, #tpu.memory_space<smem>>
    %236 = vector.broadcast %235 : f32 to vector<16x256xf32>
    %237 = arith.mulf %236, %7 : vector<16x256xf32>
    %238 = arith.addf %234, %237 : vector<16x256xf32>
    %c3_83 = arith.constant 3 : index
    %c2_84 = arith.constant 2 : index
    %239 = memref.load %arg1[%c3_83, %c2_84] : memref<8x4xf32, #tpu.memory_space<smem>>
    %240 = vector.broadcast %239 : f32 to vector<16x256xf32>
    %241 = arith.mulf %240, %8 : vector<16x256xf32>
    %242 = arith.addf %238, %241 : vector<16x256xf32>
    %c3_85 = arith.constant 3 : index
    %c3_86 = arith.constant 3 : index
    %243 = memref.load %arg1[%c3_85, %c3_86] : memref<8x4xf32, #tpu.memory_space<smem>>
    %244 = vector.broadcast %243 : f32 to vector<16x256xf32>
    %245 = arith.mulf %244, %9 : vector<16x256xf32>
    %246 = arith.addf %242, %245 : vector<16x256xf32>
    %cst_87 = arith.constant dense<0xFF800000> : vector<16xf32>
    %247 = vector.multi_reduction <maximumf>, %246, %cst_87 [1] : vector<16x256xf32> to vector<16xf32>
    %248 = vector.shape_cast %247 : vector<16xf32> to vector<16x1xf32>
    %249 = vector.broadcast %248 : vector<16x1xf32> to vector<16x256xf32>
    %250 = arith.subf %246, %249 : vector<16x256xf32>
    %251 = math.exp %250 : vector<16x256xf32>
    %cst_88 = arith.constant dense<0.000000e+00> : vector<16xf32>
    %252 = vector.multi_reduction <add>, %251, %cst_88 [1] : vector<16x256xf32> to vector<16xf32>
    %253 = vector.shape_cast %252 : vector<16xf32> to vector<16x1xf32>
    %254 = tpu.reciprocal %253 {approx = true} : vector<16x1xf32> -> vector<16x1xf32>
    %255 = arith.mulf %253, %254 : vector<16x1xf32>
    %cst_89 = arith.constant 2.000000e+00 : f32
    %256 = vector.broadcast %cst_89 : f32 to vector<16x1xf32>
    %257 = arith.subf %256, %255 : vector<16x1xf32>
    %258 = arith.mulf %254, %257 : vector<16x1xf32>
    %259 = arith.mulf %251, %2 : vector<16x256xf32>
    %cst_90 = arith.constant dense<0.000000e+00> : vector<16xf32>
    %260 = vector.multi_reduction <add>, %259, %cst_90 [1] : vector<16x256xf32> to vector<16xf32>
    %261 = vector.shape_cast %260 : vector<16xf32> to vector<16x1xf32>
    %262 = arith.mulf %261, %258 : vector<16x1xf32>
    %c7 = arith.constant 7 : index
    %c0_91 = arith.constant 0 : index
    %263 = memref.load %arg1[%c7, %c0_91] : memref<8x4xf32, #tpu.memory_space<smem>>
    %264 = vector.broadcast %263 : f32 to vector<16x256xf32>
    %265 = arith.mulf %264, %6 : vector<16x256xf32>
    %c7_92 = arith.constant 7 : index
    %c1_93 = arith.constant 1 : index
    %266 = memref.load %arg1[%c7_92, %c1_93] : memref<8x4xf32, #tpu.memory_space<smem>>
    %267 = vector.broadcast %266 : f32 to vector<16x256xf32>
    %268 = arith.mulf %267, %7 : vector<16x256xf32>
    %269 = arith.addf %265, %268 : vector<16x256xf32>
    %c7_94 = arith.constant 7 : index
    %c2_95 = arith.constant 2 : index
    %270 = memref.load %arg1[%c7_94, %c2_95] : memref<8x4xf32, #tpu.memory_space<smem>>
    %271 = vector.broadcast %270 : f32 to vector<16x256xf32>
    %272 = arith.mulf %271, %8 : vector<16x256xf32>
    %273 = arith.addf %269, %272 : vector<16x256xf32>
    %c7_96 = arith.constant 7 : index
    %c3_97 = arith.constant 3 : index
    %274 = memref.load %arg1[%c7_96, %c3_97] : memref<8x4xf32, #tpu.memory_space<smem>>
    %275 = vector.broadcast %274 : f32 to vector<16x256xf32>
    %276 = arith.mulf %275, %9 : vector<16x256xf32>
    %277 = arith.addf %273, %276 : vector<16x256xf32>
    %cst_98 = arith.constant dense<0xFF800000> : vector<16xf32>
    %278 = vector.multi_reduction <maximumf>, %277, %cst_98 [1] : vector<16x256xf32> to vector<16xf32>
    %279 = vector.shape_cast %278 : vector<16xf32> to vector<16x1xf32>
    %280 = vector.broadcast %279 : vector<16x1xf32> to vector<16x256xf32>
    %281 = arith.subf %277, %280 : vector<16x256xf32>
    %282 = math.exp %281 : vector<16x256xf32>
    %cst_99 = arith.constant dense<0.000000e+00> : vector<16xf32>
    %283 = vector.multi_reduction <add>, %282, %cst_99 [1] : vector<16x256xf32> to vector<16xf32>
    %284 = vector.shape_cast %283 : vector<16xf32> to vector<16x1xf32>
    %285 = tpu.reciprocal %284 {approx = true} : vector<16x1xf32> -> vector<16x1xf32>
    %286 = arith.mulf %284, %285 : vector<16x1xf32>
    %cst_100 = arith.constant 2.000000e+00 : f32
    %287 = vector.broadcast %cst_100 : f32 to vector<16x1xf32>
    %288 = arith.subf %287, %286 : vector<16x1xf32>
    %289 = arith.mulf %285, %288 : vector<16x1xf32>
    %290 = arith.mulf %282, %5 : vector<16x256xf32>
    %cst_101 = arith.constant dense<0.000000e+00> : vector<16xf32>
    %291 = vector.multi_reduction <add>, %290, %cst_101 [1] : vector<16x256xf32> to vector<16xf32>
    %292 = vector.shape_cast %291 : vector<16xf32> to vector<16x1xf32>
    %293 = arith.mulf %292, %289 : vector<16x1xf32>
    %294 = vector.broadcast %262 : vector<16x1xf32> to vector<16x256xf32>
    %295 = arith.subf %2, %294 : vector<16x256xf32>
    %296 = vector.broadcast %293 : vector<16x1xf32> to vector<16x256xf32>
    %297 = arith.subf %5, %296 : vector<16x256xf32>
    %298 = arith.mulf %295, %295 : vector<16x256xf32>
    %299 = arith.mulf %297, %297 : vector<16x256xf32>
    %300 = arith.addf %298, %299 : vector<16x256xf32>
    %cst_102 = arith.constant 0.000000e+00 : f32
    %301 = vector.broadcast %cst_102 : f32 to vector<16x256xf32>
    %302 = arith.subf %301, %300 : vector<16x256xf32>
    %cst_103 = arith.constant 1.250000e+01 : f32
    %303 = vector.broadcast %cst_103 : f32 to vector<16x256xf32>
    %304 = arith.mulf %302, %303 : vector<16x256xf32>
    %305 = math.exp %304 : vector<16x256xf32>
    %c0_104 = arith.constant 0 : index
    %c1024 = arith.constant 1024 : index
    %306 = vector.load %arg5[%c0_104, %c1024] : memref<16x2048xf32, #tpu.memory_space<vmem>>, vector<16x256xf32>
    %c0_105 = arith.constant 0 : index
    %c1280 = arith.constant 1280 : index
    %307 = vector.load %arg5[%c0_105, %c1280] : memref<16x2048xf32, #tpu.memory_space<vmem>>, vector<16x256xf32>
    %c0_106 = arith.constant 0 : index
    %c1536 = arith.constant 1536 : index
    %308 = vector.load %arg5[%c0_106, %c1536] : memref<16x2048xf32, #tpu.memory_space<vmem>>, vector<16x256xf32>
    %c0_107 = arith.constant 0 : index
    %c1792 = arith.constant 1792 : index
    %309 = vector.load %arg5[%c0_107, %c1792] : memref<16x2048xf32, #tpu.memory_space<vmem>>, vector<16x256xf32>
    %c0_108 = arith.constant 0 : index
    %c0_109 = arith.constant 0 : index
    %310 = memref.load %arg2[%c0_108, %c0_109] : memref<3x4xf32, #tpu.memory_space<smem>>
    %311 = vector.broadcast %310 : f32 to vector<16x256xf32>
    %312 = arith.mulf %311, %306 : vector<16x256xf32>
    %c0_110 = arith.constant 0 : index
    %c1_111 = arith.constant 1 : index
    %313 = memref.load %arg2[%c0_110, %c1_111] : memref<3x4xf32, #tpu.memory_space<smem>>
    %314 = vector.broadcast %313 : f32 to vector<16x256xf32>
    %315 = arith.mulf %314, %307 : vector<16x256xf32>
    %316 = arith.addf %312, %315 : vector<16x256xf32>
    %c0_112 = arith.constant 0 : index
    %c2_113 = arith.constant 2 : index
    %317 = memref.load %arg2[%c0_112, %c2_113] : memref<3x4xf32, #tpu.memory_space<smem>>
    %318 = vector.broadcast %317 : f32 to vector<16x256xf32>
    %319 = arith.mulf %318, %308 : vector<16x256xf32>
    %320 = arith.addf %316, %319 : vector<16x256xf32>
    %c0_114 = arith.constant 0 : index
    %c3_115 = arith.constant 3 : index
    %321 = memref.load %arg2[%c0_114, %c3_115] : memref<3x4xf32, #tpu.memory_space<smem>>
    %322 = vector.broadcast %321 : f32 to vector<16x256xf32>
    %323 = arith.mulf %322, %309 : vector<16x256xf32>
    %324 = arith.addf %320, %323 : vector<16x256xf32>
    %c0_116 = arith.constant 0 : index
    %c0_117 = arith.constant 0 : index
    %325 = memref.load %arg3[%c0_116, %c0_117] : memref<3x4xf32, #tpu.memory_space<smem>>
    %326 = vector.broadcast %325 : f32 to vector<16x256xf32>
    %327 = arith.mulf %326, %83 : vector<16x256xf32>
    %328 = arith.addf %324, %327 : vector<16x256xf32>
    %c0_118 = arith.constant 0 : index
    %c1_119 = arith.constant 1 : index
    %329 = memref.load %arg3[%c0_118, %c1_119] : memref<3x4xf32, #tpu.memory_space<smem>>
    %330 = vector.broadcast %329 : f32 to vector<16x256xf32>
    %331 = arith.mulf %330, %157 : vector<16x256xf32>
    %332 = arith.addf %328, %331 : vector<16x256xf32>
    %c0_120 = arith.constant 0 : index
    %c2_121 = arith.constant 2 : index
    %333 = memref.load %arg3[%c0_120, %c2_121] : memref<3x4xf32, #tpu.memory_space<smem>>
    %334 = vector.broadcast %333 : f32 to vector<16x256xf32>
    %335 = arith.mulf %334, %231 : vector<16x256xf32>
    %336 = arith.addf %332, %335 : vector<16x256xf32>
    %c0_122 = arith.constant 0 : index
    %c3_123 = arith.constant 3 : index
    %337 = memref.load %arg3[%c0_122, %c3_123] : memref<3x4xf32, #tpu.memory_space<smem>>
    %338 = vector.broadcast %337 : f32 to vector<16x256xf32>
    %339 = arith.mulf %338, %305 : vector<16x256xf32>
    %340 = arith.addf %336, %339 : vector<16x256xf32>
    %c0_124 = arith.constant 0 : index
    %c0_125 = arith.constant 0 : index
    %341 = vector.load %arg6[%c0_124, %c0_125] : memref<16x768xf32, #tpu.memory_space<vmem>>, vector<16x256xf32>
    tpu.vector_store %arg6[%c0_124, %c0_125], %340 {strides = array<i32>} : memref<16x768xf32, #tpu.memory_space<vmem>>, vector<16x256xf32>,
    %c1_126 = arith.constant 1 : index
    %c0_127 = arith.constant 0 : index
    %342 = memref.load %arg2[%c1_126, %c0_127] : memref<3x4xf32, #tpu.memory_space<smem>>
    %343 = vector.broadcast %342 : f32 to vector<16x256xf32>
    %344 = arith.mulf %343, %306 : vector<16x256xf32>
    %c1_128 = arith.constant 1 : index
    %c1_129 = arith.constant 1 : index
    %345 = memref.load %arg2[%c1_128, %c1_129] : memref<3x4xf32, #tpu.memory_space<smem>>
    %346 = vector.broadcast %345 : f32 to vector<16x256xf32>
    %347 = arith.mulf %346, %307 : vector<16x256xf32>
    %348 = arith.addf %344, %347 : vector<16x256xf32>
    %c1_130 = arith.constant 1 : index
    %c2_131 = arith.constant 2 : index
    %349 = memref.load %arg2[%c1_130, %c2_131] : memref<3x4xf32, #tpu.memory_space<smem>>
    %350 = vector.broadcast %349 : f32 to vector<16x256xf32>
    %351 = arith.mulf %350, %308 : vector<16x256xf32>
    %352 = arith.addf %348, %351 : vector<16x256xf32>
    %c1_132 = arith.constant 1 : index
    %c3_133 = arith.constant 3 : index
    %353 = memref.load %arg2[%c1_132, %c3_133] : memref<3x4xf32, #tpu.memory_space<smem>>
    %354 = vector.broadcast %353 : f32 to vector<16x256xf32>
    %355 = arith.mulf %354, %309 : vector<16x256xf32>
    %356 = arith.addf %352, %355 : vector<16x256xf32>
    %c1_134 = arith.constant 1 : index
    %c0_135 = arith.constant 0 : index
    %357 = memref.load %arg3[%c1_134, %c0_135] : memref<3x4xf32, #tpu.memory_space<smem>>
    %358 = vector.broadcast %357 : f32 to vector<16x256xf32>
    %359 = arith.mulf %358, %83 : vector<16x256xf32>
    %360 = arith.addf %356, %359 : vector<16x256xf32>
    %c1_136 = arith.constant 1 : index
    %c1_137 = arith.constant 1 : index
    %361 = memref.load %arg3[%c1_136, %c1_137] : memref<3x4xf32, #tpu.memory_space<smem>>
    %362 = vector.broadcast %361 : f32 to vector<16x256xf32>
    %363 = arith.mulf %362, %157 : vector<16x256xf32>
    %364 = arith.addf %360, %363 : vector<16x256xf32>
    %c1_138 = arith.constant 1 : index
    %c2_139 = arith.constant 2 : index
    %365 = memref.load %arg3[%c1_138, %c2_139] : memref<3x4xf32, #tpu.memory_space<smem>>
    %366 = vector.broadcast %365 : f32 to vector<16x256xf32>
    %367 = arith.mulf %366, %231 : vector<16x256xf32>
    %368 = arith.addf %364, %367 : vector<16x256xf32>
    %c1_140 = arith.constant 1 : index
    %c3_141 = arith.constant 3 : index
    %369 = memref.load %arg3[%c1_140, %c3_141] : memref<3x4xf32, #tpu.memory_space<smem>>
    %370 = vector.broadcast %369 : f32 to vector<16x256xf32>
    %371 = arith.mulf %370, %305 : vector<16x256xf32>
    %372 = arith.addf %368, %371 : vector<16x256xf32>
    %c0_142 = arith.constant 0 : index
    %c256_143 = arith.constant 256 : index
    %373 = vector.load %arg6[%c0_142, %c256_143] : memref<16x768xf32, #tpu.memory_space<vmem>>, vector<16x256xf32>
    tpu.vector_store %arg6[%c0_142, %c256_143], %372 {strides = array<i32>} : memref<16x768xf32, #tpu.memory_space<vmem>>, vector<16x256xf32>,
    %c2_144 = arith.constant 2 : index
    %c0_145 = arith.constant 0 : index
    %374 = memref.load %arg2[%c2_144, %c0_145] : memref<3x4xf32, #tpu.memory_space<smem>>
    %375 = vector.broadcast %374 : f32 to vector<16x256xf32>
    %376 = arith.mulf %375, %306 : vector<16x256xf32>
    %c2_146 = arith.constant 2 : index
    %c1_147 = arith.constant 1 : index
    %377 = memref.load %arg2[%c2_146, %c1_147] : memref<3x4xf32, #tpu.memory_space<smem>>
    %378 = vector.broadcast %377 : f32 to vector<16x256xf32>
    %379 = arith.mulf %378, %307 : vector<16x256xf32>
    %380 = arith.addf %376, %379 : vector<16x256xf32>
    %c2_148 = arith.constant 2 : index
    %c2_149 = arith.constant 2 : index
    %381 = memref.load %arg2[%c2_148, %c2_149] : memref<3x4xf32, #tpu.memory_space<smem>>
    %382 = vector.broadcast %381 : f32 to vector<16x256xf32>
    %383 = arith.mulf %382, %308 : vector<16x256xf32>
    %384 = arith.addf %380, %383 : vector<16x256xf32>
    %c2_150 = arith.constant 2 : index
    %c3_151 = arith.constant 3 : index
    %385 = memref.load %arg2[%c2_150, %c3_151] : memref<3x4xf32, #tpu.memory_space<smem>>
    %386 = vector.broadcast %385 : f32 to vector<16x256xf32>
    %387 = arith.mulf %386, %309 : vector<16x256xf32>
    %388 = arith.addf %384, %387 : vector<16x256xf32>
    %c2_152 = arith.constant 2 : index
    %c0_153 = arith.constant 0 : index
    %389 = memref.load %arg3[%c2_152, %c0_153] : memref<3x4xf32, #tpu.memory_space<smem>>
    %390 = vector.broadcast %389 : f32 to vector<16x256xf32>
    %391 = arith.mulf %390, %83 : vector<16x256xf32>
    %392 = arith.addf %388, %391 : vector<16x256xf32>
    %c2_154 = arith.constant 2 : index
    %c1_155 = arith.constant 1 : index
    %393 = memref.load %arg3[%c2_154, %c1_155] : memref<3x4xf32, #tpu.memory_space<smem>>
    %394 = vector.broadcast %393 : f32 to vector<16x256xf32>
    %395 = arith.mulf %394, %157 : vector<16x256xf32>
    %396 = arith.addf %392, %395 : vector<16x256xf32>
    %c2_156 = arith.constant 2 : index
    %c2_157 = arith.constant 2 : index
    %397 = memref.load %arg3[%c2_156, %c2_157] : memref<3x4xf32, #tpu.memory_space<smem>>
    %398 = vector.broadcast %397 : f32 to vector<16x256xf32>
    %399 = arith.mulf %398, %231 : vector<16x256xf32>
    %400 = arith.addf %396, %399 : vector<16x256xf32>
    %c2_158 = arith.constant 2 : index
    %c3_159 = arith.constant 3 : index
    %401 = memref.load %arg3[%c2_158, %c3_159] : memref<3x4xf32, #tpu.memory_space<smem>>
    %402 = vector.broadcast %401 : f32 to vector<16x256xf32>
    %403 = arith.mulf %402, %305 : vector<16x256xf32>
    %404 = arith.addf %400, %403 : vector<16x256xf32>
    %c0_160 = arith.constant 0 : index
    %c512_161 = arith.constant 512 : index
    %405 = vector.load %arg6[%c0_160, %c512_161] : memref<16x768xf32, #tpu.memory_space<vmem>>, vector<16x256xf32>
    tpu.vector_store %arg6[%c0_160, %c512_161], %404 {strides = array<i32>} : memref<16x768xf32, #tpu.memory_space<vmem>>, vector<16x256xf32>,
    return
  }
  func.func @transform_0(%arg0: i32) -> (i32, i32) {
    %c0_i32 = arith.constant 0 : i32
    %c0_i32_0 = arith.constant 0 : i32
    %c0_i32_1 = arith.constant 0 : i32
    return %c0_i32, %c0_i32_0 : i32, i32
  }
  func.func @transform_1(%arg0: i32) -> (i32, i32) {
    %c0_i32 = arith.constant 0 : i32
    %c0_i32_0 = arith.constant 0 : i32
    %c0_i32_1 = arith.constant 0 : i32
    return %c0_i32, %c0_i32_0 : i32, i32
  }
  func.func @transform_2(%arg0: i32) -> (i32, i32) {
    %c0_i32 = arith.constant 0 : i32
    %c0_i32_0 = arith.constant 0 : i32
    %c0_i32_1 = arith.constant 0 : i32
    return %c0_i32, %c0_i32_0 : i32, i32
  }
  func.func @transform_3(%arg0: i32) -> (i32, i32) {
    %c0_i32 = arith.constant 0 : i32
    %c0_i32_0 = arith.constant 0 : i32
    %c0_i32_1 = arith.constant 0 : i32
    return %c0_i32, %c0_i32_0 : i32, i32
  }
  func.func @transform_4(%arg0: i32) -> (i32, i32) {
    %c0_i32 = arith.constant 0 : i32
    %c0_i32_0 = arith.constant 0 : i32
    return %arg0, %c0_i32 : i32, i32
  }
  func.func @transform_5(%arg0: i32) -> (i32, i32) {
    %c0_i32 = arith.constant 0 : i32
    %c0_i32_0 = arith.constant 0 : i32
    return %arg0, %c0_i32 : i32, i32
  }
}

</mosaic_0001>

<llo_original>
// kernel: tpu_custom_call.1
$region0: #{tpu_custom_call.1}
  #allocation0 [shape = 'u32[]', space=smem, size = 0x4, offset = 0x4, fixed_abs, tag = 'smem constant byte address 0x4 - core index']
  #allocation1 [shape = 'u32[72,128]{1,0:T(1,128)}', space=vmem, size = 0x9000, scoped, tag = 'internal scratch']
  %s0 = inlined_call_operand.vmem [shape: f32[8,4], index: 0, kind: input, shape index: {}]
  %s1 = inlined_call_operand.vmem [shape: f32[3,4], index: 1, kind: input, shape index: {}]
  %s2 = inlined_call_operand.vmem [shape: f32[3,4], index: 2, kind: input, shape index: {}]
  %s3 = inlined_call_operand.vmem [shape: f32[2,256], index: 3, kind: input, shape index: {}]
  %s4 = inlined_call_operand.hbm [shape: f32[16,2048], index: 4, kind: input, shape index: {}]
  %s5 = inlined_call_operand.hbm [shape: f32[16,768], index: 5, kind: output, shape index: {}]
  %s6 = sld [smem:[#allocation0]]
  $region46: #{tpu_custom_call.1} parent=0
    _
  %s8 = ssub.s32 1, %s6
  %s9 = scalar_select 0, %s8, %s6
  $region1: #{tpu_custom_call.1} parent=0
    #allocation2 [shape = 'u8[4096]{0}', space=smem, size = 0x1000, scoped, tag = 'input window, operand 0, single buffered']
    #allocation3 [shape = 's32[1]{0}', space=sflag, size = 0x4, scoped, tag = 'scoped memory for tpu_custom_call.1']
    #allocation4 [shape = 's32[1]{0}', space=sflag, size = 0x4, scoped, tag = 'scoped memory for tpu_custom_call.1']
    #allocation5 [shape = 's32[1]{0}', space=sflag, size = 0x4, scoped, tag = 'scoped memory for tpu_custom_call.1']
    #allocation6 [shape = 'u8[2048]{0}', space=smem, size = 0x800, scoped, tag = 'input window, operand 1, single buffered']
    #allocation7 [shape = 's32[1]{0}', space=sflag, size = 0x4, scoped, tag = 'scoped memory for tpu_custom_call.1']
    #allocation8 [shape = 'u8[2048]{0}', space=smem, size = 0x800, scoped, tag = 'input window, operand 2, single buffered']
    #allocation9 [shape = 'u8[131072]{0}', space=vmem, size = 0x20000, scoped, tag = 'input window, operand 4, single buffered']
    #allocation10 [shape = 'u8[49152]{0}', space=vmem, size = 0xc000, scoped, tag = 'output window, operand 0, single buffered']
    %10 = vsyncpa [#allocation5], 0
    %11 = vsyncpa [#allocation7], 0
    %12 = vsyncpa [#allocation3], 0
    %13 = vsyncpa [#allocation4], 0
    // Predicated region
    $region2: #{tpu_custom_call.1} parent=1 // pred_check
      _
    $region3: #{tpu_custom_call.1} parent=1 // pred_check_branch
      %15 = sbr.rel (0) target = $region5
    $region4: #{tpu_custom_call.1} parent=1 // pred_region
      %17 = vsyncadd [#allocation5], 0
      %s19 = sshll.u32 %s0, 4
      %s20 = int_to_ptr.vmem [resolvable:$true] %s19
      %22 = dma.vmem_to_smem %s20, 128, [#allocation2], [#allocation5]
    $region5: #{tpu_custom_call.1} parent=1 // pred_fallthru
      _
    // Predicated region
    $region6: #{tpu_custom_call.1} parent=1 // pred_check
      _
    $region7: #{tpu_custom_call.1} parent=1 // pred_check_branch
      %24 = sbr.rel (0) target = $region9
    $region8: #{tpu_custom_call.1} parent=1 // pred_region
      %26 = vsyncadd [#allocation7], 0
      %s28 = sshll.u32 %s1, 4
      %s29 = int_to_ptr.vmem [resolvable:$true] %s28
      %31 = dma.vmem_to_smem %s29, 64, [#allocation6], [#allocation7]
    $region9: #{tpu_custom_call.1} parent=1 // pred_fallthru
      _
    // Predicated region
    $region10: #{tpu_custom_call.1} parent=1 // pred_check
      _
    $region11: #{tpu_custom_call.1} parent=1 // pred_check_branch
      %33 = sbr.rel (0) target = $region13
    $region12: #{tpu_custom_call.1} parent=1 // pred_region
      %35 = vsyncadd [#allocation7], 0
      %s37 = sshll.u32 %s2, 4
      %s38 = int_to_ptr.vmem [resolvable:$true] %s37
      %40 = dma.vmem_to_smem %s38, 64, [#allocation8], [#allocation7]
    $region13: #{tpu_custom_call.1} parent=1 // pred_fallthru
      _
    // Predicated region
    $region14: #{tpu_custom_call.1} parent=1 // pred_check
      _
    $region15: #{tpu_custom_call.1} parent=1 // pred_check_branch
      %42 = sbr.rel (0) target = $region17
    $region16: #{tpu_custom_call.1} parent=1 // pred_region
      _
    $region17: #{tpu_custom_call.1} parent=1 // pred_fallthru
      _
    // Predicated region
    $region18: #{tpu_custom_call.1} parent=1 // pred_check
      _
    $region19: #{tpu_custom_call.1} parent=1 // pred_check_branch
      %44 = sbr.rel (0) target = $region21
    $region20: #{tpu_custom_call.1} parent=1 // pred_region
      %46 = vsyncadd [#allocation3], 0
      %s47 = sshll.u32 %s4, 4
      %s48 = int_to_ptr.hbm [resolvable:$true] %s47
      %s49 = sshll.u32 [#allocation9], 4
      %s50 = int_to_ptr.vmem [resolvable:$true] %s49
      %55 = dma.hbm_to_vmem [thread:$0]  %s48, 4096, %s50, [#allocation3], 2048, 2048, 128
    $region21: #{tpu_custom_call.1} parent=1 // pred_fallthru
      _
    // Predicated region
    $region22: #{tpu_custom_call.1} parent=1 // pred_check
      _
    $region23: #{tpu_custom_call.1} parent=1 // pred_check_branch
      %57 = sbr.rel (0) target = $region25
    $region24: #{tpu_custom_call.1} parent=1 // pred_region
      %59 = dma.done [#allocation5], 128
    $region25: #{tpu_custom_call.1} parent=1 // pred_fallthru
      _
    // Predicated region
    $region26: #{tpu_custom_call.1} parent=1 // pred_check
      _
    $region27: #{tpu_custom_call.1} parent=1 // pred_check_branch
      %61 = sbr.rel (0) target = $region29
    $region28: #{tpu_custom_call.1} parent=1 // pred_region
      %63 = dma.done [#allocation7], 64
    $region29: #{tpu_custom_call.1} parent=1 // pred_fallthru
      _
    // Predicated region
    $region30: #{tpu_custom_call.1} parent=1 // pred_check
      _
    $region31: #{tpu_custom_call.1} parent=1 // pred_check_branch
      %65 = sbr.rel (0) target = $region33
    $region32: #{tpu_custom_call.1} parent=1 // pred_region
      %67 = dma.done [#allocation7], 64
    $region33: #{tpu_custom_call.1} parent=1 // pred_fallthru
      _
    // Predicated region
    $region34: #{tpu_custom_call.1} parent=1 // pred_check
      _
    $region35: #{tpu_custom_call.1} parent=1 // pred_check_branch
      %69 = sbr.rel (0) target = $region37
    $region36: #{tpu_custom_call.1} parent=1 // pred_region
      %71 = dma.done [#allocation3], 4096
    $region37: #{tpu_custom_call.1} parent=1 // pred_fallthru
      _
    %72 = sfence
    %v73 = vld [vmem:[%s3] ss:$2 sm:$0x3]
    %v75 = vperm.slane %v73, 0
    %v76 = vperm.slane %v73, 1
    %s79 = scalar_lea.vmem %s3, 1
    %v80 = vld [vmem:[%s79] ss:$2 sm:$0x3]
    %v82 = vperm.slane %v80, 0
    %v83 = vperm.slane %v80, 1
    %v86 = vld [vmem:[#allocation9] sm:$0xff]
    %v87 = vld [vmem:[#allocation9 + $0x8] sm:$0xff]
    %v88 = vld [vmem:[#allocation9 + $0x80] sm:$0xff]
    %v89 = vld [vmem:[#allocation9 + $0x88] sm:$0xff]
    %v90 = vld [vmem:[#allocation9 + $0x10] sm:$0xff]
    %v91 = vld [vmem:[#allocation9 + $0x18] sm:$0xff]
    %v92 = vld [vmem:[#allocation9 + $0x90] sm:$0xff]
    %v93 = vld [vmem:[#allocation9 + $0x98] sm:$0xff]
    %v94 = vld [vmem:[#allocation9 + $0x20] sm:$0xff]
    %v95 = vld [vmem:[#allocation9 + $0x28] sm:$0xff]
    %v96 = vld [vmem:[#allocation9 + $0xa0] sm:$0xff]
    %v97 = vld [vmem:[#allocation9 + $0xa8] sm:$0xff]
    %v98 = vld [vmem:[#allocation9 + $0x30] sm:$0xff]
    %v99 = vld [vmem:[#allocation9 + $0x38] sm:$0xff]
    %v100 = vld [vmem:[#allocation9 + $0xb0] sm:$0xff]
    %v101 = vld [vmem:[#allocation9 + $0xb8] sm:$0xff]
    %s102 = sld [smem:[#allocation2]]
    %v103 = vstv %s102
    %v104 = vmul.f32 %v103, %v86
    %v105 = vmul.f32 %v103, %v87
    %v106 = vmul.f32 %v103, %v88
    %v107 = vmul.f32 %v103, %v89
    %s108 = sld [smem:[#allocation2 + $0x1]]
    %v109 = vstv %s108
    %v110 = vmul.f32 %v109, %v90
    %v111 = vmul.f32 %v109, %v91
    %v112 = vmul.f32 %v109, %v92
    %v113 = vmul.f32 %v109, %v93
    %v114 = vadd.f32 %v104, %v110
    %v115 = vadd.f32 %v105, %v111
    %v116 = vadd.f32 %v106, %v112
    %v117 = vadd.f32 %v107, %v113
    %s118 = sld [smem:[#allocation2 + $0x2]]
    %v119 = vstv %s118
    %v120 = vmul.f32 %v119, %v94
    %v121 = vmul.f32 %v119, %v95
    %v122 = vmul.f32 %v119, %v96
    %v123 = vmul.f32 %v119, %v97
    %v124 = vadd.f32 %v114, %v120
    %v125 = vadd.f32 %v115, %v121
    %v126 = vadd.f32 %v116, %v122
    %v127 = vadd.f32 %v117, %v123
    %s128 = sld [smem:[#allocation2 + $0x3]]
    %v129 = vstv %s128
    %v130 = vmul.f32 %v129, %v98
    %v131 = vmul.f32 %v129, %v99
    %v132 = vmul.f32 %v129, %v100
    %v133 = vmul.f32 %v129, %v101
    %v134 = vadd.f32 %v124, %v130
    %v135 = vadd.f32 %v125, %v131
    %v136 = vadd.f32 %v126, %v132
    %v137 = vadd.f32 %v127, %v133
    %v138 = vmax.f32 %v134, %v135
    %139 = vmax.xlane.f32.xlu0 %v138
    %v140 = vpop.xlane.xlu0 %139
    %v141 = vmax.f32 %v136, %v137
    %142 = vmax.xlane.f32.xlu0 %v141
    %v143 = vpop.xlane.xlu0 %142
    %v144 = vsub.f32 %v134, %v140
    %v145 = vsub.f32 %v135, %v140
    %v146 = vsub.f32 %v136, %v143
    %v147 = vsub.f32 %v137, %v143
    %v148 = vmul.f32 %v144, 1.442695
    %v149 = vpow.pop %v148
    %v150 = vmul.f32 %v145, 1.442695
    %v151 = vpow.pop %v150
    %v152 = vmul.f32 %v146, 1.442695
    %v153 = vpow.pop %v152
    %v154 = vmul.f32 %v147, 1.442695
    %v155 = vpow.pop %v154
    %v156 = vadd.f32 %v149, %v151
    %157 = vadd.xlane.f32.xlu0 %v156
    %v158 = vpop.xlane.xlu0 %157
    %v159 = vadd.f32 %v153, %v155
    %160 = vadd.xlane.f32.xlu0 %v159
    %v161 = vpop.xlane.xlu0 %160
    %v162 = vrcp.pop %v158
    %v163 = vrcp.pop %v161
    %v164 = vmul.f32 %v158, %v162
    %v165 = vmul.f32 %v161, %v163
    %v166 = vsub.f32 2.0, %v164
    %v167 = vsub.f32 2.0, %v165
    %v168 = vmul.f32 %v162, %v166
    %v169 = vmul.f32 %v163, %v167
    %v170 = vmul.f32 %v149, %v75
    %v171 = vmul.f32 %v151, %v76
    %v172 = vmul.f32 %v153, %v75
    %v173 = vmul.f32 %v155, %v76
    %v174 = vadd.f32 %v170, %v171
    %175 = vadd.xlane.f32.xlu0 %v174
    %v176 = vpop.xlane.xlu0 %175
    %v177 = vadd.f32 %v172, %v173
    %178 = vadd.xlane.f32.xlu0 %v177
    %v179 = vpop.xlane.xlu0 %178
    %v180 = vmul.f32 %v176, %v168
    %v181 = vmul.f32 %v179, %v169
    %s182 = sld [smem:[#allocation2 + $0x200]]
    %v183 = vstv %s182
    %v184 = vmul.f32 %v183, %v86
    %v185 = vmul.f32 %v183, %v87
    %v186 = vmul.f32 %v183, %v88
    %v187 = vmul.f32 %v183, %v89
    %s188 = sld [smem:[#allocation2 + $0x201]]
    %v189 = vstv %s188
    %v190 = vmul.f32 %v189, %v90
    %v191 = vmul.f32 %v189, %v91
    %v192 = vmul.f32 %v189, %v92
    %v193 = vmul.f32 %v189, %v93
    %v194 = vadd.f32 %v184, %v190
    %v195 = vadd.f32 %v185, %v191
    %v196 = vadd.f32 %v186, %v192
    %v197 = vadd.f32 %v187, %v193
    %s198 = sld [smem:[#allocation2 + $0x202]]
    %v199 = vstv %s198
    %v200 = vmul.f32 %v199, %v94
    %v201 = vmul.f32 %v199, %v95
    %v202 = vmul.f32 %v199, %v96
    %v203 = vmul.f32 %v199, %v97
    %v204 = vadd.f32 %v194, %v200
    %v205 = vadd.f32 %v195, %v201
    %v206 = vadd.f32 %v196, %v202
    %v207 = vadd.f32 %v197, %v203
    %s208 = sld [smem:[#allocation2 + $0x203]]
    %v209 = vstv %s208
    %v210 = vmul.f32 %v209, %v98
    %v211 = vmul.f32 %v209, %v99
    %v212 = vmul.f32 %v209, %v100
    %v213 = vmul.f32 %v209, %v101
    %v214 = vadd.f32 %v204, %v210
    %v215 = vadd.f32 %v205, %v211
    %v216 = vadd.f32 %v206, %v212
    %v217 = vadd.f32 %v207, %v213
    %v218 = vmax.f32 %v214, %v215
    %219 = vmax.xlane.f32.xlu0 %v218
    %v220 = vpop.xlane.xlu0 %219
    %v221 = vmax.f32 %v216, %v217
    %222 = vmax.xlane.f32.xlu0 %v221
    %v223 = vpop.xlane.xlu0 %222
    %v224 = vsub.f32 %v214, %v220
    %v225 = vsub.f32 %v215, %v220
    %v226 = vsub.f32 %v216, %v223
    %v227 = vsub.f32 %v217, %v223
    %v228 = vmul.f32 %v224, 1.442695
    %v229 = vpow.pop %v228
    %v230 = vmul.f32 %v225, 1.442695
    %v231 = vpow.pop %v230
    %v232 = vmul.f32 %v226, 1.442695
    %v233 = vpow.pop %v232
    %v234 = vmul.f32 %v227, 1.442695
    %v235 = vpow.pop %v234
    %v236 = vadd.f32 %v229, %v231
    %237 = vadd.xlane.f32.xlu0 %v236
    %v238 = vpop.xlane.xlu0 %237
    %v239 = vadd.f32 %v233, %v235
    %240 = vadd.xlane.f32.xlu0 %v239
    %v241 = vpop.xlane.xlu0 %240
    %v242 = vrcp.pop %v238
    %v243 = vrcp.pop %v241
    %v244 = vmul.f32 %v238, %v242
    %v245 = vmul.f32 %v241, %v243
    %v246 = vsub.f32 2.0, %v244
    %v247 = vsub.f32 2.0, %v245
    %v248 = vmul.f32 %v242, %v246
    %v249 = vmul.f32 %v243, %v247
    %v250 = vmul.f32 %v229, %v82
    %v251 = vmul.f32 %v231, %v83
    %v252 = vmul.f32 %v233, %v82
    %v253 = vmul.f32 %v235, %v83
    %v254 = vadd.f32 %v250, %v251
    %255 = vadd.xlane.f32.xlu0 %v254
    %v256 = vpop.xlane.xlu0 %255
    %v257 = vadd.f32 %v252, %v253
    %258 = vadd.xlane.f32.xlu0 %v257
    %v259 = vpop.xlane.xlu0 %258
    %v260 = vmul.f32 %v256, %v248
    %v261 = vmul.f32 %v259, %v249
    %v262 = vsub.f32 %v75, %v180
    %v263 = vsub.f32 %v76, %v180
    %v264 = vsub.f32 %v75, %v181
    %v265 = vsub.f32 %v76, %v181
    %v266 = vsub.f32 %v82, %v260
    %v267 = vsub.f32 %v83, %v260
    %v268 = vsub.f32 %v82, %v261
    %v269 = vsub.f32 %v83, %v261
    %v270 = vmul.f32 %v262, %v262
    %v271 = vmul.f32 %v263, %v263
    %v272 = vmul.f32 %v264, %v264
    %v273 = vmul.f32 %v265, %v265
    %v274 = vmul.f32 %v266, %v266
    %v275 = vmul.f32 %v267, %v267
    %v276 = vmul.f32 %v268, %v268
    %v277 = vmul.f32 %v269, %v269
    %v278 = vadd.f32 %v270, %v274
    %v279 = vadd.f32 %v271, %v275
    %v280 = vadd.f32 %v272, %v276
    %v281 = vadd.f32 %v273, %v277
    %v282 = vsub.f32 0.0, %v278
    %v283 = vsub.f32 0.0, %v279
    %v284 = vsub.f32 0.0, %v280
    %v285 = vsub.f32 0.0, %v281
    %v286 = vmul.f32 %v282, 12.5
    %v287 = vmul.f32 %v283, 12.5
    %v288 = vmul.f32 %v284, 12.5
    %v289 = vmul.f32 %v285, 12.5
    %v290 = vmul.f32 %v286, 1.442695
    %v291 = vpow.pop %v290
    %v292 = vmul.f32 %v287, 1.442695
    %v293 = vpow.pop %v292
    %v294 = vmul.f32 %v288, 1.442695
    %v295 = vpow.pop %v294
    %v296 = vmul.f32 %v289, 1.442695
    %v297 = vpow.pop %v296
    %s298 = sld [smem:[#allocation2 + $0x80]]
    %v299 = vstv %s298
    %v300 = vmul.f32 %v299, %v86
    %v301 = vmul.f32 %v299, %v87
    %v302 = vmul.f32 %v299, %v88
    %v303 = vmul.f32 %v299, %v89
    %s304 = sld [smem:[#allocation2 + $0x81]]
    %v305 = vstv %s304
    %v306 = vmul.f32 %v305, %v90
    %v307 = vmul.f32 %v305, %v91
    %v308 = vmul.f32 %v305, %v92
    %v309 = vmul.f32 %v305, %v93
    %v310 = vadd.f32 %v300, %v306
    %v311 = vadd.f32 %v301, %v307
    %v312 = vadd.f32 %v302, %v308
    %v313 = vadd.f32 %v303, %v309
    %s314 = sld [smem:[#allocation2 + $0x82]]
    %v315 = vstv %s314
    %v316 = vmul.f32 %v315, %v94
    %v317 = vmul.f32 %v315, %v95
    %v318 = vmul.f32 %v315, %v96
    %v319 = vmul.f32 %v315, %v97
    %v320 = vadd.f32 %v310, %v316
    %v321 = vadd.f32 %v311, %v317
    %v322 = vadd.f32 %v312, %v318
    %v323 = vadd.f32 %v313, %v319
    %s324 = sld [smem:[#allocation2 + $0x83]]
    %v325 = vstv %s324
    %v326 = vmul.f32 %v325, %v98
    %v327 = vmul.f32 %v325, %v99
    %v328 = vmul.f32 %v325, %v100
    %v329 = vmul.f32 %v325, %v101
    %v330 = vadd.f32 %v320, %v326
    %v331 = vadd.f32 %v321, %v327
    %v332 = vadd.f32 %v322, %v328
    %v333 = vadd.f32 %v323, %v329
    %v334 = vmax.f32 %v330, %v331
    %335 = vmax.xlane.f32.xlu0 %v334
    %v336 = vpop.xlane.xlu0 %335
    %v337 = vmax.f32 %v332, %v333
    %338 = vmax.xlane.f32.xlu0 %v337
    %v339 = vpop.xlane.xlu0 %338
    %v340 = vsub.f32 %v330, %v336
    %v341 = vsub.f32 %v331, %v336
    %v342 = vsub.f32 %v332, %v339
    %v343 = vsub.f32 %v333, %v339
    %v344 = vmul.f32 %v340, 1.442695
    %v345 = vpow.pop %v344
    %v346 = vmul.f32 %v341, 1.442695
    %v347 = vpow.pop %v346
    %v348 = vmul.f32 %v342, 1.442695
    %v349 = vpow.pop %v348
    %v350 = vmul.f32 %v343, 1.442695
    %v351 = vpow.pop %v350
    %v352 = vadd.f32 %v345, %v347
    %353 = vadd.xlane.f32.xlu0 %v352
    %v354 = vpop.xlane.xlu0 %353
    %v355 = vadd.f32 %v349, %v351
    %356 = vadd.xlane.f32.xlu0 %v355
    %v357 = vpop.xlane.xlu0 %356
    %v358 = vrcp.pop %v354
    %v359 = vrcp.pop %v357
    %v360 = vmul.f32 %v354, %v358
    %v361 = vmul.f32 %v357, %v359
    %v362 = vsub.f32 2.0, %v360
    %v363 = vsub.f32 2.0, %v361
    %v364 = vmul.f32 %v358, %v362
    %v365 = vmul.f32 %v359, %v363
    %v366 = vmul.f32 %v345, %v75
    %v367 = vmul.f32 %v347, %v76
    %v368 = vmul.f32 %v349, %v75
    %v369 = vmul.f32 %v351, %v76
    %v370 = vadd.f32 %v366, %v367
    %371 = vadd.xlane.f32.xlu0 %v370
    %v372 = vpop.xlane.xlu0 %371
    %v373 = vadd.f32 %v368, %v369
    %374 = vadd.xlane.f32.xlu0 %v373
    %v375 = vpop.xlane.xlu0 %374
    %v376 = vmul.f32 %v372, %v364
    %v377 = vmul.f32 %v375, %v365
    %s378 = sld [smem:[#allocation2 + $0x280]]
    %v379 = vstv %s378
    %v380 = vmul.f32 %v379, %v86
    %v381 = vmul.f32 %v379, %v87
    %v382 = vmul.f32 %v379, %v88
    %v383 = vmul.f32 %v379, %v89
    %s384 = sld [smem:[#allocation2 + $0x281]]
    %v385 = vstv %s384
    %v386 = vmul.f32 %v385, %v90
    %v387 = vmul.f32 %v385, %v91
    %v388 = vmul.f32 %v385, %v92
    %v389 = vmul.f32 %v385, %v93
    %v390 = vadd.f32 %v380, %v386
    %v391 = vadd.f32 %v381, %v387
    %v392 = vadd.f32 %v382, %v388
    %v393 = vadd.f32 %v383, %v389
    %s394 = sld [smem:[#allocation2 + $0x282]]
    %v395 = vstv %s394
    %v396 = vmul.f32 %v395, %v94
    %v397 = vmul.f32 %v395, %v95
    %v398 = vmul.f32 %v395, %v96
    %v399 = vmul.f32 %v395, %v97
    %v400 = vadd.f32 %v390, %v396
    %v401 = vadd.f32 %v391, %v397
    %v402 = vadd.f32 %v392, %v398
    %v403 = vadd.f32 %v393, %v399
    %s404 = sld [smem:[#allocation2 + $0x283]]
    %v405 = vstv %s404
    %v406 = vmul.f32 %v405, %v98
    %v407 = vmul.f32 %v405, %v99
    %v408 = vmul.f32 %v405, %v100
    %v409 = vmul.f32 %v405, %v101
    %v410 = vadd.f32 %v400, %v406
    %v411 = vadd.f32 %v401, %v407
    %v412 = vadd.f32 %v402, %v408
    %v413 = vadd.f32 %v403, %v409
    %v414 = vmax.f32 %v410, %v411
    %415 = vmax.xlane.f32.xlu0 %v414
    %v416 = vpop.xlane.xlu0 %415
    %v417 = vmax.f32 %v412, %v413
    %418 = vmax.xlane.f32.xlu0 %v417
    %v419 = vpop.xlane.xlu0 %418
    %v420 = vsub.f32 %v410, %v416
    %v421 = vsub.f32 %v411, %v416
    %v422 = vsub.f32 %v412, %v419
    %v423 = vsub.f32 %v413, %v419
    %v424 = vmul.f32 %v420, 1.442695
    %v425 = vpow.pop %v424
    %v426 = vmul.f32 %v421, 1.442695
    %v427 = vpow.pop %v426
    %v428 = vmul.f32 %v422, 1.442695
    %v429 = vpow.pop %v428
    %v430 = vmul.f32 %v423, 1.442695
    %v431 = vpow.pop %v430
    %v432 = vadd.f32 %v425, %v427
    %433 = vadd.xlane.f32.xlu0 %v432
    %v434 = vpop.xlane.xlu0 %433
    %v435 = vadd.f32 %v429, %v431
    %436 = vadd.xlane.f32.xlu0 %v435
    %v437 = vpop.xlane.xlu0 %436
    %v438 = vrcp.pop %v434
    %v439 = vrcp.pop %v437
    %v440 = vmul.f32 %v434, %v438
    %v441 = vmul.f32 %v437, %v439
    %v442 = vsub.f32 2.0, %v440
    %v443 = vsub.f32 2.0, %v441
    %v444 = vmul.f32 %v438, %v442
    %v445 = vmul.f32 %v439, %v443
    %v446 = vmul.f32 %v425, %v82
    %v447 = vmul.f32 %v427, %v83
    %v448 = vmul.f32 %v429, %v82
    %v449 = vmul.f32 %v431, %v83
    %v450 = vadd.f32 %v446, %v447
    %451 = vadd.xlane.f32.xlu0 %v450
    %v452 = vpop.xlane.xlu0 %451
    %v453 = vadd.f32 %v448, %v449
    %454 = vadd.xlane.f32.xlu0 %v453
    %v455 = vpop.xlane.xlu0 %454
    %v456 = vmul.f32 %v452, %v444
    %v457 = vmul.f32 %v455, %v445
    %v458 = vsub.f32 %v75, %v376
    %v459 = vsub.f32 %v76, %v376
    %v460 = vsub.f32 %v75, %v377
    %v461 = vsub.f32 %v76, %v377
    %v462 = vsub.f32 %v82, %v456
    %v463 = vsub.f32 %v83, %v456
    %v464 = vsub.f32 %v82, %v457
    %v465 = vsub.f32 %v83, %v457
    %v466 = vmul.f32 %v458, %v458
    %v467 = vmul.f32 %v459, %v459
    %v468 = vmul.f32 %v460, %v460
    %v469 = vmul.f32 %v461, %v461
    %v470 = vmul.f32 %v462, %v462
    %v471 = vmul.f32 %v463, %v463
    %v472 = vmul.f32 %v464, %v464
    %v473 = vmul.f32 %v465, %v465
    %v474 = vadd.f32 %v466, %v470
    %v475 = vadd.f32 %v467, %v471
    %v476 = vadd.f32 %v468, %v472
    %v477 = vadd.f32 %v469, %v473
    %v478 = vsub.f32 0.0, %v474
    %v479 = vsub.f32 0.0, %v475
    %v480 = vsub.f32 0.0, %v476
    %v481 = vsub.f32 0.0, %v477
    %v482 = vmul.f32 %v478, 12.5
    %v483 = vmul.f32 %v479, 12.5
    %v484 = vmul.f32 %v480, 12.5
    %v485 = vmul.f32 %v481, 12.5
    %v486 = vmul.f32 %v482, 1.442695
    %v487 = vpow.pop %v486
    %v488 = vmul.f32 %v483, 1.442695
    %v489 = vpow.pop %v488
    %v490 = vmul.f32 %v484, 1.442695
    %v491 = vpow.pop %v490
    %v492 = vmul.f32 %v485, 1.442695
    %v493 = vpow.pop %v492
    %s494 = sld [smem:[#allocation2 + $0x100]]
    %v495 = vstv %s494
    %v496 = vmul.f32 %v495, %v86
    %v497 = vmul.f32 %v495, %v87
    %v498 = vmul.f32 %v495, %v88
    %v499 = vmul.f32 %v495, %v89
    %s500 = sld [smem:[#allocation2 + $0x101]]
    %v501 = vstv %s500
    %v502 = vmul.f32 %v501, %v90
    %v503 = vmul.f32 %v501, %v91
    %v504 = vmul.f32 %v501, %v92
    %v505 = vmul.f32 %v501, %v93
    %v506 = vadd.f32 %v496, %v502
    %v507 = vadd.f32 %v497, %v503
    %v508 = vadd.f32 %v498, %v504
    %v509 = vadd.f32 %v499, %v505
    %s510 = sld [smem:[#allocation2 + $0x102]]
    %v511 = vstv %s510
    %v512 = vmul.f32 %v511, %v94
    %v513 = vmul.f32 %v511, %v95
    %v514 = vmul.f32 %v511, %v96
    %v515 = vmul.f32 %v511, %v97
    %v516 = vadd.f32 %v506, %v512
    %v517 = vadd.f32 %v507, %v513
    %v518 = vadd.f32 %v508, %v514
    %v519 = vadd.f32 %v509, %v515
    %s520 = sld [smem:[#allocation2 + $0x103]]
    %v521 = vstv %s520
    %v522 = vmul.f32 %v521, %v98
    %v523 = vmul.f32 %v521, %v99
    %v524 = vmul.f32 %v521, %v100
    %v525 = vmul.f32 %v521, %v101
    %v526 = vadd.f32 %v516, %v522
    %v527 = vadd.f32 %v517, %v523
    %v528 = vadd.f32 %v518, %v524
    %v529 = vadd.f32 %v519, %v525
    %v530 = vmax.f32 %v526, %v527
    %531 = vmax.xlane.f32.xlu0 %v530
    %v532 = vpop.xlane.xlu0 %531
    %v533 = vmax.f32 %v528, %v529
    %534 = vmax.xlane.f32.xlu0 %v533
    %v535 = vpop.xlane.xlu0 %534
    %v536 = vsub.f32 %v526, %v532
    %v537 = vsub.f32 %v527, %v532
    %v538 = vsub.f32 %v528, %v535
    %v539 = vsub.f32 %v529, %v535
    %v540 = vmul.f32 %v536, 1.442695
    %v541 = vpow.pop %v540
    %v542 = vmul.f32 %v537, 1.442695
    %v543 = vpow.pop %v542
    %v544 = vmul.f32 %v538, 1.442695
    %v545 = vpow.pop %v544
    %v546 = vmul.f32 %v539, 1.442695
    %v547 = vpow.pop %v546
    %v548 = vadd.f32 %v541, %v543
    %549 = vadd.xlane.f32.xlu0 %v548
    %v550 = vpop.xlane.xlu0 %549
    %v551 = vadd.f32 %v545, %v547
    %552 = vadd.xlane.f32.xlu0 %v551
    %v553 = vpop.xlane.xlu0 %552
    %v554 = vrcp.pop %v550
    %v555 = vrcp.pop %v553
    %v556 = vmul.f32 %v550, %v554
    %v557 = vmul.f32 %v553, %v555
    %v558 = vsub.f32 2.0, %v556
    %v559 = vsub.f32 2.0, %v557
    %v560 = vmul.f32 %v554, %v558
    %v561 = vmul.f32 %v555, %v559
    %v562 = vmul.f32 %v541, %v75
    %v563 = vmul.f32 %v543, %v76
    %v564 = vmul.f32 %v545, %v75
    %v565 = vmul.f32 %v547, %v76
    %v566 = vadd.f32 %v562, %v563
    %567 = vadd.xlane.f32.xlu0 %v566
    %v568 = vpop.xlane.xlu0 %567
    %v569 = vadd.f32 %v564, %v565
    %570 = vadd.xlane.f32.xlu0 %v569
    %v571 = vpop.xlane.xlu0 %570
    %v572 = vmul.f32 %v568, %v560
    %v573 = vmul.f32 %v571, %v561
    %s574 = sld [smem:[#allocation2 + $0x300]]
    %v575 = vstv %s574
    %v576 = vmul.f32 %v575, %v86
    %v577 = vmul.f32 %v575, %v87
    %v578 = vmul.f32 %v575, %v88
    %v579 = vmul.f32 %v575, %v89
    %s580 = sld [smem:[#allocation2 + $0x301]]
    %v581 = vstv %s580
    %v582 = vmul.f32 %v581, %v90
    %v583 = vmul.f32 %v581, %v91
    %v584 = vmul.f32 %v581, %v92
    %v585 = vmul.f32 %v581, %v93
    %v586 = vadd.f32 %v576, %v582
    %v587 = vadd.f32 %v577, %v583
    %v588 = vadd.f32 %v578, %v584
    %v589 = vadd.f32 %v579, %v585
    %s590 = sld [smem:[#allocation2 + $0x302]]
    %v591 = vstv %s590
    %v592 = vmul.f32 %v591, %v94
    %v593 = vmul.f32 %v591, %v95
    %v594 = vmul.f32 %v591, %v96
    %v595 = vmul.f32 %v591, %v97
    %v596 = vadd.f32 %v586, %v592
    %v597 = vadd.f32 %v587, %v593
    %v598 = vadd.f32 %v588, %v594
    %v599 = vadd.f32 %v589, %v595
    %s600 = sld [smem:[#allocation2 + $0x303]]
    %v601 = vstv %s600
    %v602 = vmul.f32 %v601, %v98
    %v603 = vmul.f32 %v601, %v99
    %v604 = vmul.f32 %v601, %v100
    %v605 = vmul.f32 %v601, %v101
    %v606 = vadd.f32 %v596, %v602
    %v607 = vadd.f32 %v597, %v603
    %v608 = vadd.f32 %v598, %v604
    %v609 = vadd.f32 %v599, %v605
    %v610 = vmax.f32 %v606, %v607
    %611 = vmax.xlane.f32.xlu0 %v610
    %v612 = vpop.xlane.xlu0 %611
    %v613 = vmax.f32 %v608, %v609
    %614 = vmax.xlane.f32.xlu0 %v613
    %v615 = vpop.xlane.xlu0 %614
    %v616 = vsub.f32 %v606, %v612
    %v617 = vsub.f32 %v607, %v612
    %v618 = vsub.f32 %v608, %v615
    %v619 = vsub.f32 %v609, %v615
    %v620 = vmul.f32 %v616, 1.442695
    %v621 = vpow.pop %v620
    %v622 = vmul.f32 %v617, 1.442695
    %v623 = vpow.pop %v622
    %v624 = vmul.f32 %v618, 1.442695
    %v625 = vpow.pop %v624
    %v626 = vmul.f32 %v619, 1.442695
    %v627 = vpow.pop %v626
    %v628 = vadd.f32 %v621, %v623
    %629 = vadd.xlane.f32.xlu0 %v628
    %v630 = vpop.xlane.xlu0 %629
    %v631 = vadd.f32 %v625, %v627
    %632 = vadd.xlane.f32.xlu0 %v631
    %v633 = vpop.xlane.xlu0 %632
    %v634 = vrcp.pop %v630
    %v635 = vrcp.pop %v633
    %v636 = vmul.f32 %v630, %v634
    %v637 = vmul.f32 %v633, %v635
    %v638 = vsub.f32 2.0, %v636
    %v639 = vsub.f32 2.0, %v637
    %v640 = vmul.f32 %v634, %v638
    %v641 = vmul.f32 %v635, %v639
    %v642 = vmul.f32 %v621, %v82
    %v643 = vmul.f32 %v623, %v83
    %v644 = vmul.f32 %v625, %v82
    %v645 = vmul.f32 %v627, %v83
    %v646 = vadd.f32 %v642, %v643
    %647 = vadd.xlane.f32.xlu0 %v646
    %v648 = vpop.xlane.xlu0 %647
    %v649 = vadd.f32 %v644, %v645
    %650 = vadd.xlane.f32.xlu0 %v649
    %v651 = vpop.xlane.xlu0 %650
    %v652 = vmul.f32 %v648, %v640
    %v653 = vmul.f32 %v651, %v641
    %v654 = vsub.f32 %v75, %v572
    %v655 = vsub.f32 %v76, %v572
    %v656 = vsub.f32 %v75, %v573
    %v657 = vsub.f32 %v76, %v573
    %v658 = vsub.f32 %v82, %v652
    %v659 = vsub.f32 %v83, %v652
    %v660 = vsub.f32 %v82, %v653
    %v661 = vsub.f32 %v83, %v653
    %v662 = vmul.f32 %v654, %v654
    %v663 = vmul.f32 %v655, %v655
    %v664 = vmul.f32 %v656, %v656
    %v665 = vmul.f32 %v657, %v657
    %v666 = vmul.f32 %v658, %v658
    %v667 = vmul.f32 %v659, %v659
    %v668 = vmul.f32 %v660, %v660
    %v669 = vmul.f32 %v661, %v661
    %v670 = vadd.f32 %v662, %v666
    %v671 = vadd.f32 %v663, %v667
    %v672 = vadd.f32 %v664, %v668
    %v673 = vadd.f32 %v665, %v669
    %v674 = vsub.f32 0.0, %v670
    %v675 = vsub.f32 0.0, %v671
    %v676 = vsub.f32 0.0, %v672
    %v677 = vsub.f32 0.0, %v673
    %v678 = vmul.f32 %v674, 12.5
    %v679 = vmul.f32 %v675, 12.5
    %v680 = vmul.f32 %v676, 12.5
    %v681 = vmul.f32 %v677, 12.5
    %v682 = vmul.f32 %v678, 1.442695
    %v683 = vpow.pop %v682
    %v684 = vmul.f32 %v679, 1.442695
    %v685 = vpow.pop %v684
    %v686 = vmul.f32 %v680, 1.442695
    %v687 = vpow.pop %v686
    %v688 = vmul.f32 %v681, 1.442695
    %v689 = vpow.pop %v688
    %s690 = sld [smem:[#allocation2 + $0x180]]
    %v691 = vstv %s690
    %v692 = vmul.f32 %v691, %v86
    %v693 = vmul.f32 %v691, %v87
    %v694 = vmul.f32 %v691, %v88
    %v695 = vmul.f32 %v691, %v89
    %s696 = sld [smem:[#allocation2 + $0x181]]
    %v697 = vstv %s696
    %v698 = vmul.f32 %v697, %v90
    %v699 = vmul.f32 %v697, %v91
    %v700 = vmul.f32 %v697, %v92
    %v701 = vmul.f32 %v697, %v93
    %v702 = vadd.f32 %v692, %v698
    %v703 = vadd.f32 %v693, %v699
    %v704 = vadd.f32 %v694, %v700
    %v705 = vadd.f32 %v695, %v701
    %s706 = sld [smem:[#allocation2 + $0x182]]
    %v707 = vstv %s706
    %v708 = vmul.f32 %v707, %v94
    %v709 = vmul.f32 %v707, %v95
    %v710 = vmul.f32 %v707, %v96
    %v711 = vmul.f32 %v707, %v97
    %v712 = vadd.f32 %v702, %v708
    %v713 = vadd.f32 %v703, %v709
    %v714 = vadd.f32 %v704, %v710
    %v715 = vadd.f32 %v705, %v711
    %s716 = sld [smem:[#allocation2 + $0x183]]
    %v717 = vstv %s716
    %v718 = vmul.f32 %v717, %v98
    %v719 = vmul.f32 %v717, %v99
    %v720 = vmul.f32 %v717, %v100
    %v721 = vmul.f32 %v717, %v101
    %v722 = vadd.f32 %v712, %v718
    %v723 = vadd.f32 %v713, %v719
    %v724 = vadd.f32 %v714, %v720
    %v725 = vadd.f32 %v715, %v721
    %v726 = vmax.f32 %v722, %v723
    %727 = vmax.xlane.f32.xlu0 %v726
    %v728 = vpop.xlane.xlu0 %727
    %v729 = vmax.f32 %v724, %v725
    %730 = vmax.xlane.f32.xlu0 %v729
    %v731 = vpop.xlane.xlu0 %730
    %v732 = vsub.f32 %v722, %v728
    %v733 = vsub.f32 %v723, %v728
    %v734 = vsub.f32 %v724, %v731
    %v735 = vsub.f32 %v725, %v731
    %v736 = vmul.f32 %v732, 1.442695
    %v737 = vpow.pop %v736
    %v738 = vmul.f32 %v733, 1.442695
    %v739 = vpow.pop %v738
    %v740 = vmul.f32 %v734, 1.442695
    %v741 = vpow.pop %v740
    %v742 = vmul.f32 %v735, 1.442695
    %v743 = vpow.pop %v742
    %v744 = vadd.f32 %v737, %v739
    %745 = vadd.xlane.f32.xlu0 %v744
    %v746 = vpop.xlane.xlu0 %745
    %v747 = vadd.f32 %v741, %v743
    %748 = vadd.xlane.f32.xlu0 %v747
    %v749 = vpop.xlane.xlu0 %748
    %v750 = vrcp.pop %v746
    %v751 = vrcp.pop %v749
    %v752 = vmul.f32 %v746, %v750
    %v753 = vmul.f32 %v749, %v751
    %v754 = vsub.f32 2.0, %v752
    %v755 = vsub.f32 2.0, %v753
    %v756 = vmul.f32 %v750, %v754
    %v757 = vmul.f32 %v751, %v755
    %v758 = vmul.f32 %v737, %v75
    %v759 = vmul.f32 %v739, %v76
    %v760 = vmul.f32 %v741, %v75
    %v761 = vmul.f32 %v743, %v76
    %v762 = vadd.f32 %v758, %v759
    %763 = vadd.xlane.f32.xlu0 %v762
    %v764 = vpop.xlane.xlu0 %763
    %v765 = vadd.f32 %v760, %v761
    %766 = vadd.xlane.f32.xlu0 %v765
    %v767 = vpop.xlane.xlu0 %766
    %v768 = vmul.f32 %v764, %v756
    %v769 = vmul.f32 %v767, %v757
    %s770 = sld [smem:[#allocation2 + $0x380]]
    %v771 = vstv %s770
    %v772 = vmul.f32 %v771, %v86
    %v773 = vmul.f32 %v771, %v87
    %v774 = vmul.f32 %v771, %v88
    %v775 = vmul.f32 %v771, %v89
    %s776 = sld [smem:[#allocation2 + $0x381]]
    %v777 = vstv %s776
    %v778 = vmul.f32 %v777, %v90
    %v779 = vmul.f32 %v777, %v91
    %v780 = vmul.f32 %v777, %v92
    %v781 = vmul.f32 %v777, %v93
    %v782 = vadd.f32 %v772, %v778
    %v783 = vadd.f32 %v773, %v779
    %v784 = vadd.f32 %v774, %v780
    %v785 = vadd.f32 %v775, %v781
    %s786 = sld [smem:[#allocation2 + $0x382]]
    %v787 = vstv %s786
    %v788 = vmul.f32 %v787, %v94
    %v789 = vmul.f32 %v787, %v95
    %v790 = vmul.f32 %v787, %v96
    %v791 = vmul.f32 %v787, %v97
    %v792 = vadd.f32 %v782, %v788
    %v793 = vadd.f32 %v783, %v789
    %v794 = vadd.f32 %v784, %v790
    %v795 = vadd.f32 %v785, %v791
    %s796 = sld [smem:[#allocation2 + $0x383]]
    %v797 = vstv %s796
    %v798 = vmul.f32 %v797, %v98
    %v799 = vmul.f32 %v797, %v99
    %v800 = vmul.f32 %v797, %v100
    %v801 = vmul.f32 %v797, %v101
    %v802 = vadd.f32 %v792, %v798
    %v803 = vadd.f32 %v793, %v799
    %v804 = vadd.f32 %v794, %v800
    %v805 = vadd.f32 %v795, %v801
    %v806 = vmax.f32 %v802, %v803
    %807 = vmax.xlane.f32.xlu0 %v806
    %v808 = vpop.xlane.xlu0 %807
    %v809 = vmax.f32 %v804, %v805
    %810 = vmax.xlane.f32.xlu0 %v809
    %v811 = vpop.xlane.xlu0 %810
    %v812 = vsub.f32 %v802, %v808
    %v813 = vsub.f32 %v803, %v808
    %v814 = vsub.f32 %v804, %v811
    %v815 = vsub.f32 %v805, %v811
    %v816 = vmul.f32 %v812, 1.442695
    %v817 = vpow.pop %v816
    %v818 = vmul.f32 %v813, 1.442695
    %v819 = vpow.pop %v818
    %v820 = vmul.f32 %v814, 1.442695
    %v821 = vpow.pop %v820
    %v822 = vmul.f32 %v815, 1.442695
    %v823 = vpow.pop %v822
    %v824 = vadd.f32 %v817, %v819
    %825 = vadd.xlane.f32.xlu0 %v824
    %v826 = vpop.xlane.xlu0 %825
    %v827 = vadd.f32 %v821, %v823
    %828 = vadd.xlane.f32.xlu0 %v827
    %v829 = vpop.xlane.xlu0 %828
    %v830 = vrcp.pop %v826
    %v831 = vrcp.pop %v829
    %v832 = vmul.f32 %v826, %v830
    %v833 = vmul.f32 %v829, %v831
    %v834 = vsub.f32 2.0, %v832
    %v835 = vsub.f32 2.0, %v833
    %v836 = vmul.f32 %v830, %v834
    %v837 = vmul.f32 %v831, %v835
    %v838 = vmul.f32 %v817, %v82
    %v839 = vmul.f32 %v819, %v83
    %v840 = vmul.f32 %v821, %v82
    %v841 = vmul.f32 %v823, %v83
    %v842 = vadd.f32 %v838, %v839
    %843 = vadd.xlane.f32.xlu0 %v842
    %v844 = vpop.xlane.xlu0 %843
    %v845 = vadd.f32 %v840, %v841
    %846 = vadd.xlane.f32.xlu0 %v845
    %v847 = vpop.xlane.xlu0 %846
    %v848 = vmul.f32 %v844, %v836
    %v849 = vmul.f32 %v847, %v837
    %v850 = vsub.f32 %v75, %v768
    %v851 = vsub.f32 %v76, %v768
    %v852 = vsub.f32 %v75, %v769
    %v853 = vsub.f32 %v76, %v769
    %v854 = vsub.f32 %v82, %v848
    %v855 = vsub.f32 %v83, %v848
    %v856 = vsub.f32 %v82, %v849
    %v857 = vsub.f32 %v83, %v849
    %v858 = vmul.f32 %v850, %v850
    %v859 = vmul.f32 %v851, %v851
    %v860 = vmul.f32 %v852, %v852
    %v861 = vmul.f32 %v853, %v853
    %v862 = vmul.f32 %v854, %v854
    %v863 = vmul.f32 %v855, %v855
    %v864 = vmul.f32 %v856, %v856
    %v865 = vmul.f32 %v857, %v857
    %v866 = vadd.f32 %v858, %v862
    %v867 = vadd.f32 %v859, %v863
    %v868 = vadd.f32 %v860, %v864
    %v869 = vadd.f32 %v861, %v865
    %v870 = vsub.f32 0.0, %v866
    %v871 = vsub.f32 0.0, %v867
    %v872 = vsub.f32 0.0, %v868
    %v873 = vsub.f32 0.0, %v869
    %v874 = vmul.f32 %v870, 12.5
    %v875 = vmul.f32 %v871, 12.5
    %v876 = vmul.f32 %v872, 12.5
    %v877 = vmul.f32 %v873, 12.5
    %v878 = vmul.f32 %v874, 1.442695
    %v879 = vpow.pop %v878
    %v880 = vmul.f32 %v875, 1.442695
    %v881 = vpow.pop %v880
    %v882 = vmul.f32 %v876, 1.442695
    %v883 = vpow.pop %v882
    %v884 = vmul.f32 %v877, 1.442695
    %v885 = vpow.pop %v884
    %v886 = vld [vmem:[#allocation9 + $0x40] sm:$0xff]
    %v887 = vld [vmem:[#allocation9 + $0x48] sm:$0xff]
    %v888 = vld [vmem:[#allocation9 + $0xc0] sm:$0xff]
    %v889 = vld [vmem:[#allocation9 + $0xc8] sm:$0xff]
    %v890 = vld [vmem:[#allocation9 + $0x50] sm:$0xff]
    %v891 = vld [vmem:[#allocation9 + $0x58] sm:$0xff]
    %v892 = vld [vmem:[#allocation9 + $0xd0] sm:$0xff]
    %v893 = vld [vmem:[#allocation9 + $0xd8] sm:$0xff]
    %v894 = vld [vmem:[#allocation9 + $0x60] sm:$0xff]
    %v895 = vld [vmem:[#allocation9 + $0x68] sm:$0xff]
    %v896 = vld [vmem:[#allocation9 + $0xe0] sm:$0xff]
    %v897 = vld [vmem:[#allocation9 + $0xe8] sm:$0xff]
    %v898 = vld [vmem:[#allocation9 + $0x70] sm:$0xff]
    %v899 = vld [vmem:[#allocation9 + $0x78] sm:$0xff]
    %v900 = vld [vmem:[#allocation9 + $0xf0] sm:$0xff]
    %v901 = vld [vmem:[#allocation9 + $0xf8] sm:$0xff]
    %s902 = sld [smem:[#allocation6]]
    %v903 = vstv %s902
    %v904 = vmul.f32 %v903, %v886
    %v905 = vmul.f32 %v903, %v887
    %v906 = vmul.f32 %v903, %v888
    %v907 = vmul.f32 %v903, %v889
    %s908 = sld [smem:[#allocation6 + $0x1]]
    %v909 = vstv %s908
    %v910 = vmul.f32 %v909, %v890
    %v911 = vmul.f32 %v909, %v891
    %v912 = vmul.f32 %v909, %v892
    %v913 = vmul.f32 %v909, %v893
    %v914 = vadd.f32 %v904, %v910
    %v915 = vadd.f32 %v905, %v911
    %v916 = vadd.f32 %v906, %v912
    %v917 = vadd.f32 %v907, %v913
    %s918 = sld [smem:[#allocation6 + $0x2]]
    %v919 = vstv %s918
    %v920 = vmul.f32 %v919, %v894
    %v921 = vmul.f32 %v919, %v895
    %v922 = vmul.f32 %v919, %v896
    %v923 = vmul.f32 %v919, %v897
    %v924 = vadd.f32 %v914, %v920
    %v925 = vadd.f32 %v915, %v921
    %v926 = vadd.f32 %v916, %v922
    %v927 = vadd.f32 %v917, %v923
    %s928 = sld [smem:[#allocation6 + $0x3]]
    %v929 = vstv %s928
    %v930 = vmul.f32 %v929, %v898
    %v931 = vmul.f32 %v929, %v899
    %v932 = vmul.f32 %v929, %v900
    %v933 = vmul.f32 %v929, %v901
    %v934 = vadd.f32 %v924, %v930
    %v935 = vadd.f32 %v925, %v931
    %v936 = vadd.f32 %v926, %v932
    %v937 = vadd.f32 %v927, %v933
    %s938 = sld [smem:[#allocation8]]
    %v939 = vstv %s938
    %v940 = vmul.f32 %v939, %v291
    %v941 = vmul.f32 %v939, %v293
    %v942 = vmul.f32 %v939, %v295
    %v943 = vmul.f32 %v939, %v297
    %v944 = vadd.f32 %v934, %v940
    %v945 = vadd.f32 %v935, %v941
    %v946 = vadd.f32 %v936, %v942
    %v947 = vadd.f32 %v937, %v943
    %s948 = sld [smem:[#allocation8 + $0x1]]
    %v949 = vstv %s948
    %v950 = vmul.f32 %v949, %v487
    %v951 = vmul.f32 %v949, %v489
    %v952 = vmul.f32 %v949, %v491
    %v953 = vmul.f32 %v949, %v493
    %v954 = vadd.f32 %v944, %v950
    %v955 = vadd.f32 %v945, %v951
    %v956 = vadd.f32 %v946, %v952
    %v957 = vadd.f32 %v947, %v953
    %s958 = sld [smem:[#allocation8 + $0x2]]
    %v959 = vstv %s958
    %v960 = vmul.f32 %v959, %v683
    %v961 = vmul.f32 %v959, %v685
    %v962 = vmul.f32 %v959, %v687
    %v963 = vmul.f32 %v959, %v689
    %v964 = vadd.f32 %v954, %v960
    %v965 = vadd.f32 %v955, %v961
    %v966 = vadd.f32 %v956, %v962
    %v967 = vadd.f32 %v957, %v963
    %s968 = sld [smem:[#allocation8 + $0x3]]
    %v969 = vstv %s968
    %v970 = vmul.f32 %v969, %v879
    %v971 = vmul.f32 %v969, %v881
    %v972 = vmul.f32 %v969, %v883
    %v973 = vmul.f32 %v969, %v885
    %v974 = vadd.f32 %v964, %v970
    %v975 = vadd.f32 %v965, %v971
    %v976 = vadd.f32 %v966, %v972
    %v977 = vadd.f32 %v967, %v973
    %978 = vst [vmem:[#allocation10] sm:$0xff] %v974
    %979 = vst [vmem:[#allocation10 + $0x8] sm:$0xff] %v975
    %980 = vst [vmem:[#allocation10 + $0x30] sm:$0xff] %v976
    %981 = vst [vmem:[#allocation10 + $0x38] sm:$0xff] %v977
    %s982 = sld [smem:[#allocation6 + $0x80]]
    %v983 = vstv %s982
    %v984 = vmul.f32 %v983, %v886
    %v985 = vmul.f32 %v983, %v887
    %v986 = vmul.f32 %v983, %v888
    %v987 = vmul.f32 %v983, %v889
    %s988 = sld [smem:[#allocation6 + $0x81]]
    %v989 = vstv %s988
    %v990 = vmul.f32 %v989, %v890
    %v991 = vmul.f32 %v989, %v891
    %v992 = vmul.f32 %v989, %v892
    %v993 = vmul.f32 %v989, %v893
    %v994 = vadd.f32 %v984, %v990
    %v995 = vadd.f32 %v985, %v991
    %v996 = vadd.f32 %v986, %v992
    %v997 = vadd.f32 %v987, %v993
    %s998 = sld [smem:[#allocation6 + $0x82]]
    %v999 = vstv %s998
    %v1000 = vmul.f32 %v999, %v894
    %v1001 = vmul.f32 %v999, %v895
    %v1002 = vmul.f32 %v999, %v896
    %v1003 = vmul.f32 %v999, %v897
    %v1004 = vadd.f32 %v994, %v1000
    %v1005 = vadd.f32 %v995, %v1001
    %v1006 = vadd.f32 %v996, %v1002
    %v1007 = vadd.f32 %v997, %v1003
    %s1008 = sld [smem:[#allocation6 + $0x83]]
    %v1009 = vstv %s1008
    %v1010 = vmul.f32 %v1009, %v898
    %v1011 = vmul.f32 %v1009, %v899
    %v1012 = vmul.f32 %v1009, %v900
    %v1013 = vmul.f32 %v1009, %v901
    %v1014 = vadd.f32 %v1004, %v1010
    %v1015 = vadd.f32 %v1005, %v1011
    %v1016 = vadd.f32 %v1006, %v1012
    %v1017 = vadd.f32 %v1007, %v1013
    %s1018 = sld [smem:[#allocation8 + $0x80]]
    %v1019 = vstv %s1018
    %v1020 = vmul.f32 %v1019, %v291
    %v1021 = vmul.f32 %v1019, %v293
    %v1022 = vmul.f32 %v1019, %v295
    %v1023 = vmul.f32 %v1019, %v297
    %v1024 = vadd.f32 %v1014, %v1020
    %v1025 = vadd.f32 %v1015, %v1021
    %v1026 = vadd.f32 %v1016, %v1022
    %v1027 = vadd.f32 %v1017, %v1023
    %s1028 = sld [smem:[#allocation8 + $0x81]]
    %v1029 = vstv %s1028
    %v1030 = vmul.f32 %v1029, %v487
    %v1031 = vmul.f32 %v1029, %v489
    %v1032 = vmul.f32 %v1029, %v491
    %v1033 = vmul.f32 %v1029, %v493
    %v1034 = vadd.f32 %v1024, %v1030
    %v1035 = vadd.f32 %v1025, %v1031
    %v1036 = vadd.f32 %v1026, %v1032
    %v1037 = vadd.f32 %v1027, %v1033
    %s1038 = sld [smem:[#allocation8 + $0x82]]
    %v1039 = vstv %s1038
    %v1040 = vmul.f32 %v1039, %v683
    %v1041 = vmul.f32 %v1039, %v685
    %v1042 = vmul.f32 %v1039, %v687
    %v1043 = vmul.f32 %v1039, %v689
    %v1044 = vadd.f32 %v1034, %v1040
    %v1045 = vadd.f32 %v1035, %v1041
    %v1046 = vadd.f32 %v1036, %v1042
    %v1047 = vadd.f32 %v1037, %v1043
    %s1048 = sld [smem:[#allocation8 + $0x83]]
    %v1049 = vstv %s1048
    %v1050 = vmul.f32 %v1049, %v879
    %v1051 = vmul.f32 %v1049, %v881
    %v1052 = vmul.f32 %v1049, %v883
    %v1053 = vmul.f32 %v1049, %v885
    %v1054 = vadd.f32 %v1044, %v1050
    %v1055 = vadd.f32 %v1045, %v1051
    %v1056 = vadd.f32 %v1046, %v1052
    %v1057 = vadd.f32 %v1047, %v1053
    %1058 = vst [vmem:[#allocation10 + $0x10] sm:$0xff] %v1054
    %1059 = vst [vmem:[#allocation10 + $0x18] sm:$0xff] %v1055
    %1060 = vst [vmem:[#allocation10 + $0x40] sm:$0xff] %v1056
    %1061 = vst [vmem:[#allocation10 + $0x48] sm:$0xff] %v1057
    %s1062 = sld [smem:[#allocation6 + $0x100]]
    %v1063 = vstv %s1062
    %v1064 = vmul.f32 %v1063, %v886
    %v1065 = vmul.f32 %v1063, %v887
    %v1066 = vmul.f32 %v1063, %v888
    %v1067 = vmul.f32 %v1063, %v889
    %s1068 = sld [smem:[#allocation6 + $0x101]]
    %v1069 = vstv %s1068
    %v1070 = vmul.f32 %v1069, %v890
    %v1071 = vmul.f32 %v1069, %v891
    %v1072 = vmul.f32 %v1069, %v892
    %v1073 = vmul.f32 %v1069, %v893
    %v1074 = vadd.f32 %v1064, %v1070
    %v1075 = vadd.f32 %v1065, %v1071
    %v1076 = vadd.f32 %v1066, %v1072
    %v1077 = vadd.f32 %v1067, %v1073
    %s1078 = sld [smem:[#allocation6 + $0x102]]
    %v1079 = vstv %s1078
    %v1080 = vmul.f32 %v1079, %v894
    %v1081 = vmul.f32 %v1079, %v895
    %v1082 = vmul.f32 %v1079, %v896
    %v1083 = vmul.f32 %v1079, %v897
    %v1084 = vadd.f32 %v1074, %v1080
    %v1085 = vadd.f32 %v1075, %v1081
    %v1086 = vadd.f32 %v1076, %v1082
    %v1087 = vadd.f32 %v1077, %v1083
    %s1088 = sld [smem:[#allocation6 + $0x103]]
    %v1089 = vstv %s1088
    %v1090 = vmul.f32 %v1089, %v898
    %v1091 = vmul.f32 %v1089, %v899
    %v1092 = vmul.f32 %v1089, %v900
    %v1093 = vmul.f32 %v1089, %v901
    %v1094 = vadd.f32 %v1084, %v1090
    %v1095 = vadd.f32 %v1085, %v1091
    %v1096 = vadd.f32 %v1086, %v1092
    %v1097 = vadd.f32 %v1087, %v1093
    %s1098 = sld [smem:[#allocation8 + $0x100]]
    %v1099 = vstv %s1098
    %v1100 = vmul.f32 %v1099, %v291
    %v1101 = vmul.f32 %v1099, %v293
    %v1102 = vmul.f32 %v1099, %v295
    %v1103 = vmul.f32 %v1099, %v297
    %v1104 = vadd.f32 %v1094, %v1100
    %v1105 = vadd.f32 %v1095, %v1101
    %v1106 = vadd.f32 %v1096, %v1102
    %v1107 = vadd.f32 %v1097, %v1103
    %s1108 = sld [smem:[#allocation8 + $0x101]]
    %v1109 = vstv %s1108
    %v1110 = vmul.f32 %v1109, %v487
    %v1111 = vmul.f32 %v1109, %v489
    %v1112 = vmul.f32 %v1109, %v491
    %v1113 = vmul.f32 %v1109, %v493
    %v1114 = vadd.f32 %v1104, %v1110
    %v1115 = vadd.f32 %v1105, %v1111
    %v1116 = vadd.f32 %v1106, %v1112
    %v1117 = vadd.f32 %v1107, %v1113
    %s1118 = sld [smem:[#allocation8 + $0x102]]
    %v1119 = vstv %s1118
    %v1120 = vmul.f32 %v1119, %v683
    %v1121 = vmul.f32 %v1119, %v685
    %v1122 = vmul.f32 %v1119, %v687
    %v1123 = vmul.f32 %v1119, %v689
    %v1124 = vadd.f32 %v1114, %v1120
    %v1125 = vadd.f32 %v1115, %v1121
    %v1126 = vadd.f32 %v1116, %v1122
    %v1127 = vadd.f32 %v1117, %v1123
    %s1128 = sld [smem:[#allocation8 + $0x103]]
    %v1129 = vstv %s1128
    %v1130 = vmul.f32 %v1129, %v879
    %v1131 = vmul.f32 %v1129, %v881
    %v1132 = vmul.f32 %v1129, %v883
    %v1133 = vmul.f32 %v1129, %v885
    %v1134 = vadd.f32 %v1124, %v1130
    %v1135 = vadd.f32 %v1125, %v1131
    %v1136 = vadd.f32 %v1126, %v1132
    %v1137 = vadd.f32 %v1127, %v1133
    %1138 = vst [vmem:[#allocation10 + $0x20] sm:$0xff] %v1134
    %1139 = vst [vmem:[#allocation10 + $0x28] sm:$0xff] %v1135
    %1140 = vst [vmem:[#allocation10 + $0x50] sm:$0xff] %v1136
    %1141 = vst [vmem:[#allocation10 + $0x58] sm:$0xff] %v1137
    // Predicated region
    $region38: #{tpu_custom_call.1} parent=1 // pred_check
      _
    $region39: #{tpu_custom_call.1} parent=1 // pred_check_branch
      %1143 = sbr.rel (0) target = $region41
    $region40: #{tpu_custom_call.1} parent=1 // pred_region
      %1145 = vsyncadd [#allocation4], 0
      %s1146 = sshll.u32 [#allocation10], 4
      %s1147 = int_to_ptr.vmem [resolvable:$true] %s1146
      %s1148 = sshll.u32 %s5, 4
      %s1149 = int_to_ptr.hbm [resolvable:$true] %s1148
      %1154 = dma.vmem_to_hbm [thread:$0]  %s1147, 1536, %s1149, [#allocation4], 768, 768, 48
    $region41: #{tpu_custom_call.1} parent=1 // pred_fallthru
      _
    // Predicated region
    $region42: #{tpu_custom_call.1} parent=1 // pred_check
      _
    $region43: #{tpu_custom_call.1} parent=1 // pred_check_branch
      %1156 = sbr.rel (0) target = $region45
    $region44: #{tpu_custom_call.1} parent=1 // pred_region
      %1158 = dma.done [#allocation4], 1536
    $region45: #{tpu_custom_call.1} parent=1 // pred_fallthru
      _
    %1159 = vsyncpa [#allocation3], 1
    %1160 = vsyncpa [#allocation4], 1
    %1161 = vsyncpa [#allocation5], 1
    %1162 = vsyncpa [#allocation7], 1

</llo_original>
